<compile_context>
chip_gen: v7x
topology: tpu7x:2x2x1
jax: 0.10.0
libtpu: 0.0.40
codegen_flags: <defaults>
</compile_context>

<pallas_src>
import functools
import math

import jax
import jax.numpy as jnp
from jax import lax
from jax.experimental import pallas as pl
from jax.experimental.pallas import tpu as pltpu


# ---------------------------------------------------------------------------
# Fused kernel: LN(x) -> q/kv projections -> per-head attention -> out proj
# ---------------------------------------------------------------------------
def _fused_kernel(self_attend, n_heads, head_dim, eps, *refs):
    if self_attend:
        (x_ref, gamma_ref, beta_ref, wq_ref, wkv_ref, wout_ref, bout_ref,
         o_ref, q_sc, kv_sc) = refs
        line_ref = None
    else:
        (x_ref, line_ref, gamma_ref, beta_ref, wq_ref, wkv_ref, wout_ref,
         bout_ref, o_ref, q_sc, kv_sc) = refs

    HD = n_heads * head_dim
    S, dim = x_ref.shape
    L = kv_sc.shape[0]
    Lh = L // 2

    # ---- LayerNorm (f32, biased variance: matches torch.nn.LayerNorm) ----
    xv = x_ref[...].astype(jnp.float32)                       # (S, dim)
    mean = jnp.mean(xv, axis=-1, keepdims=True)
    var = jnp.mean((xv - mean) ** 2, axis=-1, keepdims=True)
    xn = (xv - mean) * lax.rsqrt(var + eps)
    xn = xn * gamma_ref[...] + beta_ref[...]

    # ---- projections: bf16 MXU operands, f32 accumulation, kept in VMEM ----
    xn_bf = xn.astype(jnp.bfloat16)
    q_sc[...] = jnp.dot(xn_bf, wq_ref[...], preferred_element_type=jnp.float32)
    line_bf = xn_bf if self_attend else line_ref[...].astype(jnp.bfloat16)
    kv_sc[...] = jnp.dot(line_bf, wkv_ref[...], preferred_element_type=jnp.float32)

    # ---- per-head attention fused with the output projection ----
    scale = 1.0 / math.sqrt(head_dim)
    acc = jnp.zeros((S, dim), jnp.float32)
    for h in range(n_heads):                                   # small, unrolled
        lo, hi = h * head_dim, (h + 1) * head_dim
        qh = (q_sc[:, lo:hi] * scale).astype(jnp.bfloat16)     # (S, hd)
        # kv.chunk(2, dim=1) + reshape quirk: even/odd token halves per head.
        k0 = kv_sc[0:Lh, lo:hi].astype(jnp.bfloat16)           # tokens 2r
        k1 = kv_sc[0:Lh, HD + lo:HD + hi].astype(jnp.bfloat16)  # tokens 2r+1
        v0 = kv_sc[Lh:L, lo:hi].astype(jnp.bfloat16)
        v1 = kv_sc[Lh:L, HD + lo:HD + hi].astype(jnp.bfloat16)

        s0 = lax.dot_general(qh, k0, (((1,), (1,)), ((), ())),
                             preferred_element_type=jnp.float32)  # (S, L/2)
        s1 = lax.dot_general(qh, k1, (((1,), (1,)), ((), ())),
                             preferred_element_type=jnp.float32)
        m = jnp.maximum(jnp.max(s0, axis=-1, keepdims=True),
                        jnp.max(s1, axis=-1, keepdims=True))
        p0 = jnp.exp(s0 - m)
        p1 = jnp.exp(s1 - m)
        denom = (jnp.sum(p0, axis=-1, keepdims=True)
                 + jnp.sum(p1, axis=-1, keepdims=True))
        inv = pl.reciprocal(denom, approx=True)                # EUP, not VALU div
        oh = (jnp.dot(p0.astype(jnp.bfloat16), v0, preferred_element_type=jnp.float32)
              + jnp.dot(p1.astype(jnp.bfloat16), v1, preferred_element_type=jnp.float32))
        oh = oh * inv                                          # (S, hd)
        # Accumulate this head's slice of the output projection (no concat).
        acc = acc + jnp.dot(oh.astype(jnp.bfloat16), wout_ref[lo:hi, :],
                            preferred_element_type=jnp.float32)

    o_ref[...] = acc + bout_ref[...]


# ---------------------------------------------------------------------------
# Wrapper
# ---------------------------------------------------------------------------
def cross_attention(x, line, params, *, n_heads, head_dim, eps=1e-5):
    B, S, dim = x.shape
    HD = n_heads * head_dim
    self_attend = line is None
    L = S if self_attend else line.shape[1]
    assert L % 2 == 0, "kv.chunk(2, dim=1) requires an even sequence length"

    gamma = params["ln_w"].reshape(1, dim).astype(jnp.float32)
    beta = params["ln_b"].reshape(1, dim).astype(jnp.float32)
    wq_t = params["wq"].T.astype(jnp.bfloat16)        # (dim, HD)
    wkv_t = params["wkv"].T.astype(jnp.bfloat16)      # (dim, 2*HD)
    wout_t = params["wout"].T.astype(jnp.bfloat16)    # (HD, dim)
    bout = params["bout"].reshape(1, dim).astype(jnp.float32)

    # Build in_specs; the self-attend path never DMAs `line` at all.
    in_specs = [pl.BlockSpec((None, S, dim), lambda b: (b, 0, 0))]
    inputs = [x]
    if not self_attend:
        in_specs.append(pl.BlockSpec((None, L, dim), lambda b: (b, 0, 0)))
        inputs.append(line)
    in_specs += [
        pl.BlockSpec((1, dim), lambda b: (0, 0)),        # gamma
        pl.BlockSpec((1, dim), lambda b: (0, 0)),        # beta
        pl.BlockSpec((dim, HD), lambda b: (0, 0)),       # wq^T
        pl.BlockSpec((dim, 2 * HD), lambda b: (0, 0)),   # wkv^T
        pl.BlockSpec((HD, dim), lambda b: (0, 0)),       # wout^T
        pl.BlockSpec((1, dim), lambda b: (0, 0)),        # bout
    ]
    inputs += [gamma, beta, wq_t, wkv_t, wout_t, bout]

    flops = 2 * B * (S * dim * HD + L * dim * 2 * HD
                     + 2 * n_heads * S * L * head_dim + S * HD * dim)
    transcendentals = B * (n_heads * S * (L + 1) + S)
    bytes_accessed = (x.size * 4
                      + (0 if self_attend else line.size * 4)
                      + (wq_t.size + wkv_t.size + wout_t.size) * 2
                      + (gamma.size + beta.size + bout.size) * 4
                      + B * S * dim * 4)

    out = pl.pallas_call(
        functools.partial(_fused_kernel, self_attend, n_heads, head_dim, eps),
        grid=(B,),
        in_specs=in_specs,
        out_specs=pl.BlockSpec((None, S, dim), lambda b: (b, 0, 0)),
        out_shape=jax.ShapeDtypeStruct((B, S, dim), jnp.float32),
        scratch_shapes=[
            pltpu.VMEM((S, HD), jnp.float32),        # q (never hits HBM)
            pltpu.VMEM((L, 2 * HD), jnp.float32),    # kv (never hits HBM)
        ],
        compiler_params=pltpu.CompilerParams(dimension_semantics=("parallel",)),
        cost_estimate=pl.CostEstimate(flops=flops,
                                      transcendentals=transcendentals,
                                      bytes_accessed=bytes_accessed),
    )(*inputs)
    return out


# ---------------------------------------------------------------------------
# Pure-JAX f32 reference (mirrors the PyTorch forward exactly)
# ---------------------------------------------------------------------------
def cross_attention_ref(x, line, params, *, n_heads, head_dim, eps=1e-5):
    B, S, dim = x.shape
    HD = n_heads * head_dim
    mean = jnp.mean(x, axis=-1, keepdims=True)
    var = jnp.mean((x - mean) ** 2, axis=-1, keepdims=True)
    xn = (x - mean) / jnp.sqrt(var + eps) * params["ln_w"] + params["ln_b"]
    line_in = xn if line is None else line
    L = line_in.shape[1]
    q = xn @ params["wq"].T
    kv = line_in @ params["wkv"].T
    k_raw, v_raw = kv[:, : L // 2], kv[:, L // 2:]
    qh = q.reshape(B, S, n_heads, head_dim).transpose(0, 2, 1, 3)
    kh = k_raw.reshape(B, L, n_heads, head_dim).transpose(0, 2, 1, 3)
    vh = v_raw.reshape(B, L, n_heads, head_dim).transpose(0, 2, 1, 3)
    s = jnp.einsum("bhqd,bhkd->bhqk", qh, kh) / math.sqrt(head_dim)
    p = jax.nn.softmax(s, axis=-1)
    o = jnp.einsum("bhqk,bhkd->bhqd", p, vh)
    o = o.transpose(0, 2, 1, 3).reshape(B, S, HD)
    return o @ params["wout"].T + params["bout"]


if __name__ == "__main__":
    key = jax.random.PRNGKey(0)
    B, S, L, dim = 2, 16, 16, 32
    n_heads, head_dim = 4, 8
    HD = n_heads * head_dim

    ks = jax.random.split(key, 8)
    x = jax.random.normal(ks[0], (B, S, dim), jnp.float32)
    line = jax.random.normal(ks[1], (B, L, dim), jnp.float32)
    params = {
        "ln_w": 1.0 + 0.1 * jax.random.normal(ks[2], (dim,), jnp.float32),
        "ln_b": 0.1 * jax.random.normal(ks[3], (dim,), jnp.float32),
        "wq": 0.1 * jax.random.normal(ks[4], (HD, dim), jnp.float32),
        "wkv": 0.1 * jax.random.normal(ks[5], (2 * HD, dim), jnp.float32),
        "wout": 0.1 * jax.random.normal(ks[6], (dim, HD), jnp.float32),
        "bout": 0.1 * jax.random.normal(ks[7], (dim,), jnp.float32),
    }

    # Exercise both the cross-attention (explicit `line`) and self-attention paths.
    for ln in (line, None):
        out = cross_attention(x, ln, params, n_heads=n_heads, head_dim=head_dim)
        out = jax.block_until_ready(out)
        ref = cross_attention_ref(x, ln, params, n_heads=n_heads, head_dim=head_dim)
        assert out.shape == (B, S, dim)
        err = float(jnp.max(jnp.abs(out - ref)))
        # bf16 MXU operands + approx reciprocal => compare with bf16-level tolerance.
        assert jnp.allclose(out, ref, atol=2e-2, rtol=2e-2), err

    print("KERNEL_OK")
</pallas_src>

<mosaic_0001>
module attributes {stable_mosaic.version = 11 : i64} {
  func.func @_fused_kernel(%arg0: i32, %arg1: memref<1x16x32xf32, #tpu.memory_space<vmem>>, %arg2: memref<1x16x32xf32, #tpu.memory_space<vmem>>, %arg3: memref<1x32xf32, #tpu.memory_space<vmem>>, %arg4: memref<1x32xf32, #tpu.memory_space<vmem>>, %arg5: memref<32x32xbf16, #tpu.memory_space<vmem>>, %arg6: memref<32x64xbf16, #tpu.memory_space<vmem>>, %arg7: memref<32x32xbf16, #tpu.memory_space<vmem>>, %arg8: memref<1x32xf32, #tpu.memory_space<vmem>>, %arg9: memref<1x16x32xf32, #tpu.memory_space<vmem>>, %arg10: memref<16x32xf32, #tpu.memory_space<vmem>>, %arg11: memref<16x64xf32, #tpu.memory_space<vmem>>) attributes {dimension_semantics = [#tpu.dimension_semantics<parallel>], iteration_bounds = array<i64: 2>, scalar_prefetch = 0 : i64, scratch_operands = 2 : i64, tpu.core_type = #tpu.core_type<tc>, window_params = [{transform_indices = @transform_0, window_bounds = array<i64: 1, 16, 32>}, {transform_indices = @transform_1, window_bounds = array<i64: 1, 16, 32>}, {pipeline_mode = #tpu.pipeline_mode<synchronous>, transform_indices = @transform_2, window_bounds = array<i64: 1, 32>}, {pipeline_mode = #tpu.pipeline_mode<synchronous>, transform_indices = @transform_3, window_bounds = array<i64: 1, 32>}, {pipeline_mode = #tpu.pipeline_mode<synchronous>, transform_indices = @transform_4, window_bounds = array<i64: 32, 32>}, {pipeline_mode = #tpu.pipeline_mode<synchronous>, transform_indices = @transform_5, window_bounds = array<i64: 32, 64>}, {pipeline_mode = #tpu.pipeline_mode<synchronous>, transform_indices = @transform_6, window_bounds = array<i64: 32, 32>}, {pipeline_mode = #tpu.pipeline_mode<synchronous>, transform_indices = @transform_7, window_bounds = array<i64: 1, 32>}, {transform_indices = @transform_8, window_bounds = array<i64: 1, 16, 32>}]} {
    %c0 = arith.constant 0 : index
    %c0_0 = arith.constant 0 : index
    %c0_1 = arith.constant 0 : index
    %0 = vector.load %arg1[%c0, %c0_0, %c0_1] : memref<1x16x32xf32, #tpu.memory_space<vmem>>, vector<1x16x32xf32>
    %1 = vector.shape_cast %0 : vector<1x16x32xf32> to vector<16x32xf32>
    %cst = arith.constant dense<0.000000e+00> : vector<16xf32>
    %2 = vector.multi_reduction <add>, %1, %cst [1] : vector<16x32xf32> to vector<16xf32>
    %3 = vector.shape_cast %2 : vector<16xf32> to vector<16x1xf32>
    %cst_2 = arith.constant 3.200000e+01 : f32
    %4 = vector.broadcast %cst_2 : f32 to vector<16x1xf32>
    %5 = arith.divf %3, %4 : vector<16x1xf32>
    %6 = vector.broadcast %5 : vector<16x1xf32> to vector<16x32xf32>
    %7 = arith.subf %1, %6 : vector<16x32xf32>
    %8 = arith.mulf %7, %7 : vector<16x32xf32>
    %cst_3 = arith.constant dense<0.000000e+00> : vector<16xf32>
    %9 = vector.multi_reduction <add>, %8, %cst_3 [1] : vector<16x32xf32> to vector<16xf32>
    %10 = vector.shape_cast %9 : vector<16xf32> to vector<16x1xf32>
    %cst_4 = arith.constant 3.200000e+01 : f32
    %11 = vector.broadcast %cst_4 : f32 to vector<16x1xf32>
    %12 = arith.divf %10, %11 : vector<16x1xf32>
    %13 = vector.broadcast %5 : vector<16x1xf32> to vector<16x32xf32>
    %14 = arith.subf %1, %13 : vector<16x32xf32>
    %cst_5 = arith.constant 9.99999974E-6 : f32
    %15 = vector.broadcast %cst_5 : f32 to vector<16x1xf32>
    %16 = arith.addf %12, %15 : vector<16x1xf32>
    %17 = math.rsqrt %16 : vector<16x1xf32>
    %18 = vector.broadcast %17 : vector<16x1xf32> to vector<16x32xf32>
    %19 = arith.mulf %14, %18 : vector<16x32xf32>
    %c0_6 = arith.constant 0 : index
    %c0_7 = arith.constant 0 : index
    %20 = vector.load %arg3[%c0_6, %c0_7] : memref<1x32xf32, #tpu.memory_space<vmem>>, vector<1x32xf32>
    %21 = vector.broadcast %20 : vector<1x32xf32> to vector<16x32xf32>
    %22 = arith.mulf %19, %21 : vector<16x32xf32>
    %c0_8 = arith.constant 0 : index
    %c0_9 = arith.constant 0 : index
    %23 = vector.load %arg4[%c0_8, %c0_9] : memref<1x32xf32, #tpu.memory_space<vmem>>, vector<1x32xf32>
    %24 = vector.broadcast %23 : vector<1x32xf32> to vector<16x32xf32>
    %25 = arith.addf %22, %24 : vector<16x32xf32>
    %26 = arith.truncf %25 : vector<16x32xf32> to vector<16x32xbf16>
    %c0_10 = arith.constant 0 : index
    %c0_11 = arith.constant 0 : index
    %27 = vector.load %arg5[%c0_10, %c0_11] : memref<32x32xbf16, #tpu.memory_space<vmem>>, vector<32x32xbf16>
    %cst_12 = arith.constant dense<0.000000e+00> : vector<16x32xf32>
    %28 = tpu.matmul %26, %27, %cst_12 {dimension_numbers = #tpu.dot_dimension_numbers<[1], [0], [0], [1], [0, 0, 1, 1], [], []>} : vector<16x32xbf16>, vector<32x32xbf16>, vector<16x32xf32> -> vector<16x32xf32>
    %c0_13 = arith.constant 0 : index
    %c0_14 = arith.constant 0 : index
    %29 = vector.load %arg10[%c0_13, %c0_14] : memref<16x32xf32, #tpu.memory_space<vmem>>, vector<16x32xf32>
    tpu.vector_store %arg10[%c0_13, %c0_14], %28 {strides = array<i32>} : memref<16x32xf32, #tpu.memory_space<vmem>>, vector<16x32xf32>,
    %c0_15 = arith.constant 0 : index
    %c0_16 = arith.constant 0 : index
    %c0_17 = arith.constant 0 : index
    %30 = vector.load %arg2[%c0_15, %c0_16, %c0_17] : memref<1x16x32xf32, #tpu.memory_space<vmem>>, vector<1x16x32xf32>
    %31 = vector.shape_cast %30 : vector<1x16x32xf32> to vector<16x32xf32>
    %32 = arith.truncf %31 : vector<16x32xf32> to vector<16x32xbf16>
    %c0_18 = arith.constant 0 : index
    %c0_19 = arith.constant 0 : index
    %33 = vector.load %arg6[%c0_18, %c0_19] : memref<32x64xbf16, #tpu.memory_space<vmem>>, vector<32x64xbf16>
    %cst_20 = arith.constant dense<0.000000e+00> : vector<16x64xf32>
    %34 = tpu.matmul %32, %33, %cst_20 {dimension_numbers = #tpu.dot_dimension_numbers<[1], [0], [0], [1], [0, 0, 1, 1], [], []>} : vector<16x32xbf16>, vector<32x64xbf16>, vector<16x64xf32> -> vector<16x64xf32>
    %c0_21 = arith.constant 0 : index
    %c0_22 = arith.constant 0 : index
    %35 = vector.load %arg11[%c0_21, %c0_22] : memref<16x64xf32, #tpu.memory_space<vmem>>, vector<16x64xf32>
    tpu.vector_store %arg11[%c0_21, %c0_22], %34 {strides = array<i32>} : memref<16x64xf32, #tpu.memory_space<vmem>>, vector<16x64xf32>,
    %cst_23 = arith.constant 0.000000e+00 : f32
    %36 = vector.broadcast %cst_23 : f32 to vector<16x32xf32>
    %c0_24 = arith.constant 0 : index
    %c0_25 = arith.constant 0 : index
    %37 = vector.load %arg10[%c0_24, %c0_25] : memref<16x32xf32, #tpu.memory_space<vmem>>, vector<16x8xf32>
    %cst_26 = arith.constant 0.353553385 : f32
    %38 = vector.broadcast %cst_26 : f32 to vector<16x8xf32>
    %39 = arith.mulf %37, %38 : vector<16x8xf32>
    %40 = arith.truncf %39 : vector<16x8xf32> to vector<16x8xbf16>
    %c0_27 = arith.constant 0 : index
    %c0_28 = arith.constant 0 : index
    %41 = vector.load %arg11[%c0_27, %c0_28] : memref<16x64xf32, #tpu.memory_space<vmem>>, vector<8x8xf32>
    %42 = arith.truncf %41 : vector<8x8xf32> to vector<8x8xbf16>
    %c0_29 = arith.constant 0 : index
    %c32 = arith.constant 32 : index
    %43 = vector.load %arg11[%c0_29, %c32] : memref<16x64xf32, #tpu.memory_space<vmem>>, vector<8x8xf32>
    %44 = arith.truncf %43 : vector<8x8xf32> to vector<8x8xbf16>
    %c8 = arith.constant 8 : index
    %c0_30 = arith.constant 0 : index
    %45 = vector.load %arg11[%c8, %c0_30] : memref<16x64xf32, #tpu.memory_space<vmem>>, vector<8x8xf32>
    %46 = arith.truncf %45 : vector<8x8xf32> to vector<8x8xbf16>
    %c8_31 = arith.constant 8 : index
    %c32_32 = arith.constant 32 : index
    %47 = vector.load %arg11[%c8_31, %c32_32] : memref<16x64xf32, #tpu.memory_space<vmem>>, vector<8x8xf32>
    %48 = arith.truncf %47 : vector<8x8xf32> to vector<8x8xbf16>
    %cst_33 = arith.constant dense<0.000000e+00> : vector<16x8xf32>
    %49 = tpu.matmul %40, %42, %cst_33 {dimension_numbers = #tpu.dot_dimension_numbers<[1], [1], [0], [0], [0, 0, 1, 0], [], []>} : vector<16x8xbf16>, vector<8x8xbf16>, vector<16x8xf32> -> vector<16x8xf32>
    %cst_34 = arith.constant dense<0.000000e+00> : vector<16x8xf32>
    %50 = tpu.matmul %40, %44, %cst_34 {dimension_numbers = #tpu.dot_dimension_numbers<[1], [1], [0], [0], [0, 0, 1, 0], [], []>} : vector<16x8xbf16>, vector<8x8xbf16>, vector<16x8xf32> -> vector<16x8xf32>
    %cst_35 = arith.constant dense<0xFF800000> : vector<16xf32>
    %51 = vector.multi_reduction <maximumf>, %49, %cst_35 [1] : vector<16x8xf32> to vector<16xf32>
    %52 = vector.shape_cast %51 : vector<16xf32> to vector<16x1xf32>
    %cst_36 = arith.constant dense<0xFF800000> : vector<16xf32>
    %53 = vector.multi_reduction <maximumf>, %50, %cst_36 [1] : vector<16x8xf32> to vector<16xf32>
    %54 = vector.shape_cast %53 : vector<16xf32> to vector<16x1xf32>
    %55 = arith.maximumf %52, %54 : vector<16x1xf32>
    %56 = vector.broadcast %55 : vector<16x1xf32> to vector<16x8xf32>
    %57 = arith.subf %49, %56 : vector<16x8xf32>
    %58 = math.exp %57 : vector<16x8xf32>
    %59 = vector.broadcast %55 : vector<16x1xf32> to vector<16x8xf32>
    %60 = arith.subf %50, %59 : vector<16x8xf32>
    %61 = math.exp %60 : vector<16x8xf32>
    %cst_37 = arith.constant dense<0.000000e+00> : vector<16xf32>
    %62 = vector.multi_reduction <add>, %58, %cst_37 [1] : vector<16x8xf32> to vector<16xf32>
    %63 = vector.shape_cast %62 : vector<16xf32> to vector<16x1xf32>
    %cst_38 = arith.constant dense<0.000000e+00> : vector<16xf32>
    %64 = vector.multi_reduction <add>, %61, %cst_38 [1] : vector<16x8xf32> to vector<16xf32>
    %65 = vector.shape_cast %64 : vector<16xf32> to vector<16x1xf32>
    %66 = arith.addf %63, %65 : vector<16x1xf32>
    %67 = tpu.reciprocal %66 {approx = true} : vector<16x1xf32> -> vector<16x1xf32>
    %68 = arith.truncf %58 : vector<16x8xf32> to vector<16x8xbf16>
    %cst_39 = arith.constant dense<0.000000e+00> : vector<16x8xf32>
    %69 = tpu.matmul %68, %46, %cst_39 {dimension_numbers = #tpu.dot_dimension_numbers<[1], [0], [0], [1], [0, 0, 1, 1], [], []>} : vector<16x8xbf16>, vector<8x8xbf16>, vector<16x8xf32> -> vector<16x8xf32>
    %70 = arith.truncf %61 : vector<16x8xf32> to vector<16x8xbf16>
    %cst_40 = arith.constant dense<0.000000e+00> : vector<16x8xf32>
    %71 = tpu.matmul %70, %48, %cst_40 {dimension_numbers = #tpu.dot_dimension_numbers<[1], [0], [0], [1], [0, 0, 1, 1], [], []>} : vector<16x8xbf16>, vector<8x8xbf16>, vector<16x8xf32> -> vector<16x8xf32>
    %72 = arith.addf %69, %71 : vector<16x8xf32>
    %73 = vector.broadcast %67 : vector<16x1xf32> to vector<16x8xf32>
    %74 = arith.mulf %72, %73 : vector<16x8xf32>
    %75 = arith.truncf %74 : vector<16x8xf32> to vector<16x8xbf16>
    %c0_41 = arith.constant 0 : index
    %c0_42 = arith.constant 0 : index
    %76 = vector.load %arg7[%c0_41, %c0_42] : memref<32x32xbf16, #tpu.memory_space<vmem>>, vector<8x32xbf16>
    %cst_43 = arith.constant dense<0.000000e+00> : vector<16x32xf32>
    %77 = tpu.matmul %75, %76, %cst_43 {dimension_numbers = #tpu.dot_dimension_numbers<[1], [0], [0], [1], [0, 0, 1, 1], [], []>} : vector<16x8xbf16>, vector<8x32xbf16>, vector<16x32xf32> -> vector<16x32xf32>
    %78 = arith.addf %36, %77 : vector<16x32xf32>
    %c0_44 = arith.constant 0 : index
    %c8_45 = arith.constant 8 : index
    %79 = vector.load %arg10[%c0_44, %c8_45] : memref<16x32xf32, #tpu.memory_space<vmem>>, vector<16x8xf32>
    %cst_46 = arith.constant 0.353553385 : f32
    %80 = vector.broadcast %cst_46 : f32 to vector<16x8xf32>
    %81 = arith.mulf %79, %80 : vector<16x8xf32>
    %82 = arith.truncf %81 : vector<16x8xf32> to vector<16x8xbf16>
    %c0_47 = arith.constant 0 : index
    %c8_48 = arith.constant 8 : index
    %83 = vector.load %arg11[%c0_47, %c8_48] : memref<16x64xf32, #tpu.memory_space<vmem>>, vector<8x8xf32>
    %84 = arith.truncf %83 : vector<8x8xf32> to vector<8x8xbf16>
    %c0_49 = arith.constant 0 : index
    %c40 = arith.constant 40 : index
    %85 = vector.load %arg11[%c0_49, %c40] : memref<16x64xf32, #tpu.memory_space<vmem>>, vector<8x8xf32>
    %86 = arith.truncf %85 : vector<8x8xf32> to vector<8x8xbf16>
    %c8_50 = arith.constant 8 : index
    %c8_51 = arith.constant 8 : index
    %87 = vector.load %arg11[%c8_50, %c8_51] : memref<16x64xf32, #tpu.memory_space<vmem>>, vector<8x8xf32>
    %88 = arith.truncf %87 : vector<8x8xf32> to vector<8x8xbf16>
    %c8_52 = arith.constant 8 : index
    %c40_53 = arith.constant 40 : index
    %89 = vector.load %arg11[%c8_52, %c40_53] : memref<16x64xf32, #tpu.memory_space<vmem>>, vector<8x8xf32>
    %90 = arith.truncf %89 : vector<8x8xf32> to vector<8x8xbf16>
    %cst_54 = arith.constant dense<0.000000e+00> : vector<16x8xf32>
    %91 = tpu.matmul %82, %84, %cst_54 {dimension_numbers = #tpu.dot_dimension_numbers<[1], [1], [0], [0], [0, 0, 1, 0], [], []>} : vector<16x8xbf16>, vector<8x8xbf16>, vector<16x8xf32> -> vector<16x8xf32>
    %cst_55 = arith.constant dense<0.000000e+00> : vector<16x8xf32>
    %92 = tpu.matmul %82, %86, %cst_55 {dimension_numbers = #tpu.dot_dimension_numbers<[1], [1], [0], [0], [0, 0, 1, 0], [], []>} : vector<16x8xbf16>, vector<8x8xbf16>, vector<16x8xf32> -> vector<16x8xf32>
    %cst_56 = arith.constant dense<0xFF800000> : vector<16xf32>
    %93 = vector.multi_reduction <maximumf>, %91, %cst_56 [1] : vector<16x8xf32> to vector<16xf32>
    %94 = vector.shape_cast %93 : vector<16xf32> to vector<16x1xf32>
    %cst_57 = arith.constant dense<0xFF800000> : vector<16xf32>
    %95 = vector.multi_reduction <maximumf>, %92, %cst_57 [1] : vector<16x8xf32> to vector<16xf32>
    %96 = vector.shape_cast %95 : vector<16xf32> to vector<16x1xf32>
    %97 = arith.maximumf %94, %96 : vector<16x1xf32>
    %98 = vector.broadcast %97 : vector<16x1xf32> to vector<16x8xf32>
    %99 = arith.subf %91, %98 : vector<16x8xf32>
    %100 = math.exp %99 : vector<16x8xf32>
    %101 = vector.broadcast %97 : vector<16x1xf32> to vector<16x8xf32>
    %102 = arith.subf %92, %101 : vector<16x8xf32>
    %103 = math.exp %102 : vector<16x8xf32>
    %cst_58 = arith.constant dense<0.000000e+00> : vector<16xf32>
    %104 = vector.multi_reduction <add>, %100, %cst_58 [1] : vector<16x8xf32> to vector<16xf32>
    %105 = vector.shape_cast %104 : vector<16xf32> to vector<16x1xf32>
    %cst_59 = arith.constant dense<0.000000e+00> : vector<16xf32>
    %106 = vector.multi_reduction <add>, %103, %cst_59 [1] : vector<16x8xf32> to vector<16xf32>
    %107 = vector.shape_cast %106 : vector<16xf32> to vector<16x1xf32>
    %108 = arith.addf %105, %107 : vector<16x1xf32>
    %109 = tpu.reciprocal %108 {approx = true} : vector<16x1xf32> -> vector<16x1xf32>
    %110 = arith.truncf %100 : vector<16x8xf32> to vector<16x8xbf16>
    %cst_60 = arith.constant dense<0.000000e+00> : vector<16x8xf32>
    %111 = tpu.matmul %110, %88, %cst_60 {dimension_numbers = #tpu.dot_dimension_numbers<[1], [0], [0], [1], [0, 0, 1, 1], [], []>} : vector<16x8xbf16>, vector<8x8xbf16>, vector<16x8xf32> -> vector<16x8xf32>
    %112 = arith.truncf %103 : vector<16x8xf32> to vector<16x8xbf16>
    %cst_61 = arith.constant dense<0.000000e+00> : vector<16x8xf32>
    %113 = tpu.matmul %112, %90, %cst_61 {dimension_numbers = #tpu.dot_dimension_numbers<[1], [0], [0], [1], [0, 0, 1, 1], [], []>} : vector<16x8xbf16>, vector<8x8xbf16>, vector<16x8xf32> -> vector<16x8xf32>
    %114 = arith.addf %111, %113 : vector<16x8xf32>
    %115 = vector.broadcast %109 : vector<16x1xf32> to vector<16x8xf32>
    %116 = arith.mulf %114, %115 : vector<16x8xf32>
    %117 = arith.truncf %116 : vector<16x8xf32> to vector<16x8xbf16>
    %c8_62 = arith.constant 8 : index
    %c0_63 = arith.constant 0 : index
    %118 = vector.load %arg7[%c8_62, %c0_63] : memref<32x32xbf16, #tpu.memory_space<vmem>>, vector<8x32xbf16>
    %cst_64 = arith.constant dense<0.000000e+00> : vector<16x32xf32>
    %119 = tpu.matmul %117, %118, %cst_64 {dimension_numbers = #tpu.dot_dimension_numbers<[1], [0], [0], [1], [0, 0, 1, 1], [], []>} : vector<16x8xbf16>, vector<8x32xbf16>, vector<16x32xf32> -> vector<16x32xf32>
    %120 = arith.addf %78, %119 : vector<16x32xf32>
    %c0_65 = arith.constant 0 : index
    %c16 = arith.constant 16 : index
    %121 = vector.load %arg10[%c0_65, %c16] : memref<16x32xf32, #tpu.memory_space<vmem>>, vector<16x8xf32>
    %cst_66 = arith.constant 0.353553385 : f32
    %122 = vector.broadcast %cst_66 : f32 to vector<16x8xf32>
    %123 = arith.mulf %121, %122 : vector<16x8xf32>
    %124 = arith.truncf %123 : vector<16x8xf32> to vector<16x8xbf16>
    %c0_67 = arith.constant 0 : index
    %c16_68 = arith.constant 16 : index
    %125 = vector.load %arg11[%c0_67, %c16_68] : memref<16x64xf32, #tpu.memory_space<vmem>>, vector<8x8xf32>
    %126 = arith.truncf %125 : vector<8x8xf32> to vector<8x8xbf16>
    %c0_69 = arith.constant 0 : index
    %c48 = arith.constant 48 : index
    %127 = vector.load %arg11[%c0_69, %c48] : memref<16x64xf32, #tpu.memory_space<vmem>>, vector<8x8xf32>
    %128 = arith.truncf %127 : vector<8x8xf32> to vector<8x8xbf16>
    %c8_70 = arith.constant 8 : index
    %c16_71 = arith.constant 16 : index
    %129 = vector.load %arg11[%c8_70, %c16_71] : memref<16x64xf32, #tpu.memory_space<vmem>>, vector<8x8xf32>
    %130 = arith.truncf %129 : vector<8x8xf32> to vector<8x8xbf16>
    %c8_72 = arith.constant 8 : index
    %c48_73 = arith.constant 48 : index
    %131 = vector.load %arg11[%c8_72, %c48_73] : memref<16x64xf32, #tpu.memory_space<vmem>>, vector<8x8xf32>
    %132 = arith.truncf %131 : vector<8x8xf32> to vector<8x8xbf16>
    %cst_74 = arith.constant dense<0.000000e+00> : vector<16x8xf32>
    %133 = tpu.matmul %124, %126, %cst_74 {dimension_numbers = #tpu.dot_dimension_numbers<[1], [1], [0], [0], [0, 0, 1, 0], [], []>} : vector<16x8xbf16>, vector<8x8xbf16>, vector<16x8xf32> -> vector<16x8xf32>
    %cst_75 = arith.constant dense<0.000000e+00> : vector<16x8xf32>
    %134 = tpu.matmul %124, %128, %cst_75 {dimension_numbers = #tpu.dot_dimension_numbers<[1], [1], [0], [0], [0, 0, 1, 0], [], []>} : vector<16x8xbf16>, vector<8x8xbf16>, vector<16x8xf32> -> vector<16x8xf32>
    %cst_76 = arith.constant dense<0xFF800000> : vector<16xf32>
    %135 = vector.multi_reduction <maximumf>, %133, %cst_76 [1] : vector<16x8xf32> to vector<16xf32>
    %136 = vector.shape_cast %135 : vector<16xf32> to vector<16x1xf32>
    %cst_77 = arith.constant dense<0xFF800000> : vector<16xf32>
    %137 = vector.multi_reduction <maximumf>, %134, %cst_77 [1] : vector<16x8xf32> to vector<16xf32>
    %138 = vector.shape_cast %137 : vector<16xf32> to vector<16x1xf32>
    %139 = arith.maximumf %136, %138 : vector<16x1xf32>
    %140 = vector.broadcast %139 : vector<16x1xf32> to vector<16x8xf32>
    %141 = arith.subf %133, %140 : vector<16x8xf32>
    %142 = math.exp %141 : vector<16x8xf32>
    %143 = vector.broadcast %139 : vector<16x1xf32> to vector<16x8xf32>
    %144 = arith.subf %134, %143 : vector<16x8xf32>
    %145 = math.exp %144 : vector<16x8xf32>
    %cst_78 = arith.constant dense<0.000000e+00> : vector<16xf32>
    %146 = vector.multi_reduction <add>, %142, %cst_78 [1] : vector<16x8xf32> to vector<16xf32>
    %147 = vector.shape_cast %146 : vector<16xf32> to vector<16x1xf32>
    %cst_79 = arith.constant dense<0.000000e+00> : vector<16xf32>
    %148 = vector.multi_reduction <add>, %145, %cst_79 [1] : vector<16x8xf32> to vector<16xf32>
    %149 = vector.shape_cast %148 : vector<16xf32> to vector<16x1xf32>
    %150 = arith.addf %147, %149 : vector<16x1xf32>
    %151 = tpu.reciprocal %150 {approx = true} : vector<16x1xf32> -> vector<16x1xf32>
    %152 = arith.truncf %142 : vector<16x8xf32> to vector<16x8xbf16>
    %cst_80 = arith.constant dense<0.000000e+00> : vector<16x8xf32>
    %153 = tpu.matmul %152, %130, %cst_80 {dimension_numbers = #tpu.dot_dimension_numbers<[1], [0], [0], [1], [0, 0, 1, 1], [], []>} : vector<16x8xbf16>, vector<8x8xbf16>, vector<16x8xf32> -> vector<16x8xf32>
    %154 = arith.truncf %145 : vector<16x8xf32> to vector<16x8xbf16>
    %cst_81 = arith.constant dense<0.000000e+00> : vector<16x8xf32>
    %155 = tpu.matmul %154, %132, %cst_81 {dimension_numbers = #tpu.dot_dimension_numbers<[1], [0], [0], [1], [0, 0, 1, 1], [], []>} : vector<16x8xbf16>, vector<8x8xbf16>, vector<16x8xf32> -> vector<16x8xf32>
    %156 = arith.addf %153, %155 : vector<16x8xf32>
    %157 = vector.broadcast %151 : vector<16x1xf32> to vector<16x8xf32>
    %158 = arith.mulf %156, %157 : vector<16x8xf32>
    %159 = arith.truncf %158 : vector<16x8xf32> to vector<16x8xbf16>
    %c16_82 = arith.constant 16 : index
    %c0_83 = arith.constant 0 : index
    %160 = vector.load %arg7[%c16_82, %c0_83] : memref<32x32xbf16, #tpu.memory_space<vmem>>, vector<8x32xbf16>
    %cst_84 = arith.constant dense<0.000000e+00> : vector<16x32xf32>
    %161 = tpu.matmul %159, %160, %cst_84 {dimension_numbers = #tpu.dot_dimension_numbers<[1], [0], [0], [1], [0, 0, 1, 1], [], []>} : vector<16x8xbf16>, vector<8x32xbf16>, vector<16x32xf32> -> vector<16x32xf32>
    %162 = arith.addf %120, %161 : vector<16x32xf32>
    %c0_85 = arith.constant 0 : index
    %c24 = arith.constant 24 : index
    %163 = vector.load %arg10[%c0_85, %c24] : memref<16x32xf32, #tpu.memory_space<vmem>>, vector<16x8xf32>
    %cst_86 = arith.constant 0.353553385 : f32
    %164 = vector.broadcast %cst_86 : f32 to vector<16x8xf32>
    %165 = arith.mulf %163, %164 : vector<16x8xf32>
    %166 = arith.truncf %165 : vector<16x8xf32> to vector<16x8xbf16>
    %c0_87 = arith.constant 0 : index
    %c24_88 = arith.constant 24 : index
    %167 = vector.load %arg11[%c0_87, %c24_88] : memref<16x64xf32, #tpu.memory_space<vmem>>, vector<8x8xf32>
    %168 = arith.truncf %167 : vector<8x8xf32> to vector<8x8xbf16>
    %c0_89 = arith.constant 0 : index
    %c56 = arith.constant 56 : index
    %169 = vector.load %arg11[%c0_89, %c56] : memref<16x64xf32, #tpu.memory_space<vmem>>, vector<8x8xf32>
    %170 = arith.truncf %169 : vector<8x8xf32> to vector<8x8xbf16>
    %c8_90 = arith.constant 8 : index
    %c24_91 = arith.constant 24 : index
    %171 = vector.load %arg11[%c8_90, %c24_91] : memref<16x64xf32, #tpu.memory_space<vmem>>, vector<8x8xf32>
    %172 = arith.truncf %171 : vector<8x8xf32> to vector<8x8xbf16>
    %c8_92 = arith.constant 8 : index
    %c56_93 = arith.constant 56 : index
    %173 = vector.load %arg11[%c8_92, %c56_93] : memref<16x64xf32, #tpu.memory_space<vmem>>, vector<8x8xf32>
    %174 = arith.truncf %173 : vector<8x8xf32> to vector<8x8xbf16>
    %cst_94 = arith.constant dense<0.000000e+00> : vector<16x8xf32>
    %175 = tpu.matmul %166, %168, %cst_94 {dimension_numbers = #tpu.dot_dimension_numbers<[1], [1], [0], [0], [0, 0, 1, 0], [], []>} : vector<16x8xbf16>, vector<8x8xbf16>, vector<16x8xf32> -> vector<16x8xf32>
    %cst_95 = arith.constant dense<0.000000e+00> : vector<16x8xf32>
    %176 = tpu.matmul %166, %170, %cst_95 {dimension_numbers = #tpu.dot_dimension_numbers<[1], [1], [0], [0], [0, 0, 1, 0], [], []>} : vector<16x8xbf16>, vector<8x8xbf16>, vector<16x8xf32> -> vector<16x8xf32>
    %cst_96 = arith.constant dense<0xFF800000> : vector<16xf32>
    %177 = vector.multi_reduction <maximumf>, %175, %cst_96 [1] : vector<16x8xf32> to vector<16xf32>
    %178 = vector.shape_cast %177 : vector<16xf32> to vector<16x1xf32>
    %cst_97 = arith.constant dense<0xFF800000> : vector<16xf32>
    %179 = vector.multi_reduction <maximumf>, %176, %cst_97 [1] : vector<16x8xf32> to vector<16xf32>
    %180 = vector.shape_cast %179 : vector<16xf32> to vector<16x1xf32>
    %181 = arith.maximumf %178, %180 : vector<16x1xf32>
    %182 = vector.broadcast %181 : vector<16x1xf32> to vector<16x8xf32>
    %183 = arith.subf %175, %182 : vector<16x8xf32>
    %184 = math.exp %183 : vector<16x8xf32>
    %185 = vector.broadcast %181 : vector<16x1xf32> to vector<16x8xf32>
    %186 = arith.subf %176, %185 : vector<16x8xf32>
    %187 = math.exp %186 : vector<16x8xf32>
    %cst_98 = arith.constant dense<0.000000e+00> : vector<16xf32>
    %188 = vector.multi_reduction <add>, %184, %cst_98 [1] : vector<16x8xf32> to vector<16xf32>
    %189 = vector.shape_cast %188 : vector<16xf32> to vector<16x1xf32>
    %cst_99 = arith.constant dense<0.000000e+00> : vector<16xf32>
    %190 = vector.multi_reduction <add>, %187, %cst_99 [1] : vector<16x8xf32> to vector<16xf32>
    %191 = vector.shape_cast %190 : vector<16xf32> to vector<16x1xf32>
    %192 = arith.addf %189, %191 : vector<16x1xf32>
    %193 = tpu.reciprocal %192 {approx = true} : vector<16x1xf32> -> vector<16x1xf32>
    %194 = arith.truncf %184 : vector<16x8xf32> to vector<16x8xbf16>
    %cst_100 = arith.constant dense<0.000000e+00> : vector<16x8xf32>
    %195 = tpu.matmul %194, %172, %cst_100 {dimension_numbers = #tpu.dot_dimension_numbers<[1], [0], [0], [1], [0, 0, 1, 1], [], []>} : vector<16x8xbf16>, vector<8x8xbf16>, vector<16x8xf32> -> vector<16x8xf32>
    %196 = arith.truncf %187 : vector<16x8xf32> to vector<16x8xbf16>
    %cst_101 = arith.constant dense<0.000000e+00> : vector<16x8xf32>
    %197 = tpu.matmul %196, %174, %cst_101 {dimension_numbers = #tpu.dot_dimension_numbers<[1], [0], [0], [1], [0, 0, 1, 1], [], []>} : vector<16x8xbf16>, vector<8x8xbf16>, vector<16x8xf32> -> vector<16x8xf32>
    %198 = arith.addf %195, %197 : vector<16x8xf32>
    %199 = vector.broadcast %193 : vector<16x1xf32> to vector<16x8xf32>
    %200 = arith.mulf %198, %199 : vector<16x8xf32>
    %201 = arith.truncf %200 : vector<16x8xf32> to vector<16x8xbf16>
    %c24_102 = arith.constant 24 : index
    %c0_103 = arith.constant 0 : index
    %202 = vector.load %arg7[%c24_102, %c0_103] : memref<32x32xbf16, #tpu.memory_space<vmem>>, vector<8x32xbf16>
    %cst_104 = arith.constant dense<0.000000e+00> : vector<16x32xf32>
    %203 = tpu.matmul %201, %202, %cst_104 {dimension_numbers = #tpu.dot_dimension_numbers<[1], [0], [0], [1], [0, 0, 1, 1], [], []>} : vector<16x8xbf16>, vector<8x32xbf16>, vector<16x32xf32> -> vector<16x32xf32>
    %204 = arith.addf %162, %203 : vector<16x32xf32>
    %c0_105 = arith.constant 0 : index
    %c0_106 = arith.constant 0 : index
    %205 = vector.load %arg8[%c0_105, %c0_106] : memref<1x32xf32, #tpu.memory_space<vmem>>, vector<1x32xf32>
    %206 = vector.broadcast %205 : vector<1x32xf32> to vector<16x32xf32>
    %207 = arith.addf %204, %206 : vector<16x32xf32>
    %c0_107 = arith.constant 0 : index
    %c0_108 = arith.constant 0 : index
    %c0_109 = arith.constant 0 : index
    %208 = vector.load %arg9[%c0_107, %c0_108, %c0_109] : memref<1x16x32xf32, #tpu.memory_space<vmem>>, vector<1x16x32xf32>
    %209 = vector.shape_cast %208 : vector<1x16x32xf32> to vector<16x32xf32>
    %210 = vector.shape_cast %207 : vector<16x32xf32> to vector<1x16x32xf32>
    tpu.vector_store %arg9[%c0_107, %c0_108, %c0_109], %210 {strides = array<i32>} : memref<1x16x32xf32, #tpu.memory_space<vmem>>, vector<1x16x32xf32>,
    return
  }
  func.func @transform_0(%arg0: i32) -> (i32, i32, i32) {
    %c0_i32 = arith.constant 0 : i32
    %c0_i32_0 = arith.constant 0 : i32
    %c0_i32_1 = arith.constant 0 : i32
    return %arg0, %c0_i32, %c0_i32_0 : i32, i32, i32
  }
  func.func @transform_1(%arg0: i32) -> (i32, i32, i32) {
    %c0_i32 = arith.constant 0 : i32
    %c0_i32_0 = arith.constant 0 : i32
    %c0_i32_1 = arith.constant 0 : i32
    return %arg0, %c0_i32, %c0_i32_0 : i32, i32, i32
  }
  func.func @transform_2(%arg0: i32) -> (i32, i32) {
    %c0_i32 = arith.constant 0 : i32
    %c0_i32_0 = arith.constant 0 : i32
    %c0_i32_1 = arith.constant 0 : i32
    return %c0_i32, %c0_i32_0 : i32, i32
  }
  func.func @transform_3(%arg0: i32) -> (i32, i32) {
    %c0_i32 = arith.constant 0 : i32
    %c0_i32_0 = arith.constant 0 : i32
    %c0_i32_1 = arith.constant 0 : i32
    return %c0_i32, %c0_i32_0 : i32, i32
  }
  func.func @transform_4(%arg0: i32) -> (i32, i32) {
    %c0_i32 = arith.constant 0 : i32
    %c0_i32_0 = arith.constant 0 : i32
    %c0_i32_1 = arith.constant 0 : i32
    return %c0_i32, %c0_i32_0 : i32, i32
  }
  func.func @transform_5(%arg0: i32) -> (i32, i32) {
    %c0_i32 = arith.constant 0 : i32
    %c0_i32_0 = arith.constant 0 : i32
    %c0_i32_1 = arith.constant 0 : i32
    return %c0_i32, %c0_i32_0 : i32, i32
  }
  func.func @transform_6(%arg0: i32) -> (i32, i32) {
    %c0_i32 = arith.constant 0 : i32
    %c0_i32_0 = arith.constant 0 : i32
    %c0_i32_1 = arith.constant 0 : i32
    return %c0_i32, %c0_i32_0 : i32, i32
  }
  func.func @transform_7(%arg0: i32) -> (i32, i32) {
    %c0_i32 = arith.constant 0 : i32
    %c0_i32_0 = arith.constant 0 : i32
    %c0_i32_1 = arith.constant 0 : i32
    return %c0_i32, %c0_i32_0 : i32, i32
  }
  func.func @transform_8(%arg0: i32) -> (i32, i32, i32) {
    %c0_i32 = arith.constant 0 : i32
    %c0_i32_0 = arith.constant 0 : i32
    %c0_i32_1 = arith.constant 0 : i32
    return %arg0, %c0_i32, %c0_i32_0 : i32, i32, i32
  }
}

</mosaic_0001>

<llo_original>
// kernel: tpu_custom_call.1
$region0: #{tpu_custom_call.1}
  #allocation0 [shape = 'u32[]', space=smem, size = 0x4, offset = 0x4, fixed_abs, tag = 'smem constant byte address 0x4 - core index']
  #allocation1 [shape = 'u32[144,128]{1,0:T(1,128)}', space=vmem, size = 0x12000, scoped, tag = 'internal scratch']
  #allocation2 [shape = 'f32[16,32]{1,0:T(8,128)}', space=vmem, size = 0x2000, scoped, tag = 'scratch operand']
  #allocation3 [shape = 'f32[16,64]{1,0:T(8,128)}', space=vmem, size = 0x2000, scoped, tag = 'scratch operand']
  %s0 = inlined_call_operand.hbm [shape: f32[2,16,32], index: 0, kind: input, shape index: {}]
  %s1 = inlined_call_operand.hbm [shape: f32[2,16,32], index: 1, kind: input, shape index: {}]
  %s2 = inlined_call_operand.vmem [shape: f32[1,32], index: 2, kind: input, shape index: {}]
  %s3 = inlined_call_operand.vmem [shape: f32[1,32], index: 3, kind: input, shape index: {}]
  %s4 = inlined_call_operand.hbm [shape: bf16[32,32], index: 4, kind: input, shape index: {}]
  %s5 = inlined_call_operand.vmem [shape: bf16[32,64], index: 5, kind: input, shape index: {}]
  %s6 = inlined_call_operand.hbm [shape: bf16[32,32], index: 6, kind: input, shape index: {}]
  %s7 = inlined_call_operand.vmem [shape: f32[1,32], index: 7, kind: input, shape index: {}]
  %s8 = inlined_call_operand.hbm [shape: f32[2,16,32], index: 8, kind: output, shape index: {}]
  %s9 = sld [smem:[#allocation0]]
  $region81: #{tpu_custom_call.1} parent=0
    _
  %s11 = ssub.s32 1, %s9
  %s12 = scalar_select 0, %s11, %s9
  $region1: #{tpu_custom_call.1} parent=0
    #allocation4 [shape = 'u8[16384]{0}', space=vmem, size = 0x4000, scoped, tag = 'input window, operand 0']
    #allocation5 [shape = 's32[2]{0}', space=sflag, size = 0x8, scoped, tag = 'scoped memory for tpu_custom_call.1']
    #allocation6 [shape = 's32[2]{0}', space=sflag, size = 0x8, scoped, tag = 'scoped memory for tpu_custom_call.1']
    #allocation7 [shape = 'u8[16384]{0}', space=vmem, size = 0x4000, scoped, tag = 'input window, operand 1']
    #allocation8 [shape = 's32[2]{0}', space=sflag, size = 0x8, scoped, tag = 'scoped memory for tpu_custom_call.1']
    #allocation9 [shape = 'u8[8192]{0}', space=vmem, size = 0x2000, scoped, tag = 'input window, operand 4, single buffered']
    #allocation10 [shape = 'u8[8192]{0}', space=vmem, size = 0x2000, scoped, tag = 'input window, operand 6, single buffered']
    #allocation11 [shape = 's32[1]{0}', space=sflag, size = 0x4, scoped, tag = 'scoped memory for tpu_custom_call.1']
    #allocation12 [shape = 'u8[16384]{0}', space=vmem, size = 0x4000, scoped, tag = 'output window, operand 0']
    %13 = vsyncpa [#allocation5], 0
    %s14 = scalar_lea.sflag [#allocation5], 1
    %15 = vsyncpa %s14, 0
    %16 = vsyncpa [#allocation8], 0
    %s17 = scalar_lea.sflag [#allocation8], 1
    %18 = vsyncpa %s17, 0
    %19 = vsyncpa [#allocation11], 0
    %20 = vsyncpa [#allocation6], 0
    %s21 = scalar_lea.sflag [#allocation6], 1
    %22 = vsyncpa %s21, 0
    loop: start=0, step=1, limit=4
    $region2: #{tpu_custom_call.1} parent=1 // loop_pre_header
      _
    $region3: #{tpu_custom_call.1} parent=1 // loop_header
      %s24 = sphi 0, %s28
      %p25 = scmp.ge.s32.totalorder %s24, 4
      %s34 = sphi 0, %s36
      %s37 = sphi 0, %s34
      %s38 = sphi 0, %s37
      %s54 = sphi 0, %s38
      %s60 = sphi 0, %s62
      %s63 = sphi 0, %s60
      %s64 = sphi 0, %s63
      %s80 = sphi 0, %s64
      %s84 = sphi 0, %s84
      %s86 = sphi 0, %s84
      %s87 = sphi 0, %s86
      %s101 = sphi 0, %s87
      %s105 = sphi 0, %s105
      %s107 = sphi 0, %s105
      %s108 = sphi 0, %s107
      %s122 = sphi 0, %s108
      %s126 = sphi 0, %s126
      %s128 = sphi 0, %s126
      %s129 = sphi 0, %s128
      %s143 = sphi 0, %s129
      %s147 = sphi 0, %s147
      %s149 = sphi 0, %s147
      %s150 = sphi 0, %s149
      %s164 = sphi 0, %s150
      %s168 = sphi 0, %s168
      %s170 = sphi 0, %s168
      %s171 = sphi 0, %s170
      %s185 = sphi 0, %s171
      %s189 = sphi 0, %s189
      %s191 = sphi 0, %s189
      %s192 = sphi 0, %s191
      %s206 = sphi 0, %s192
      %s212 = sphi 0, %s214
      %s215 = sphi 0, %s212
      %s216 = sphi 0, %s215
      %s232 = sphi 0, %s216
    $region4: #{tpu_custom_call.1} parent=1 // loop_header_branch
      %27 = sbr.rel (%p25) target = $region8
    $region5: #{tpu_custom_call.1} parent=1 // loop_body
      %s29 = ssub.s32 %s24, 1
      %s30 = ssub.s32 %s24, 2
      %s31 = sadd.s32 %s24, 1
      %s32 = ssub.s32 %s24, %s31
      %p33 = scmp.eq.s32.totalorder %s32, 0
      %s35 = sadd.s32 %s34, 1
      %s36 = scalar_select %p33, %s34, %s35
      %p39 = pneg %p33
      %p40 = scmp.eq.s32.totalorder %s24, 1
      %p41 = por %p39, %p40
      %p42 = scmp.ne.s32.totalorder %s34, %s37
      %p43 = scmp.eq.s32.totalorder %s24, 0
      %p44 = por %p42, %p43
      %p45 = scmp.ne.s32.totalorder %s34, %s37
      %p46 = scmp.eq.s32.totalorder %s29, 1
      %p47 = por %p45, %p46
      %p48 = scmp.ne.s32.totalorder %s37, %s38
      %p49 = scmp.eq.s32.totalorder %s29, 0
      %p50 = por %p48, %p49
      %p51 = scmp.ne.s32.totalorder %s37, %s38
      %p52 = scmp.eq.s32.totalorder %s30, 1
      %p53 = por %p51, %p52
      %p55 = scmp.ne.s32.totalorder %s38, %s54
      %p56 = scmp.eq.s32.totalorder %s30, 0
      %p57 = por %p55, %p56
      %s58 = ssub.s32 %s24, %s31
      %p59 = scmp.eq.s32.totalorder %s58, 0
      %s61 = sadd.s32 %s60, 1
      %s62 = scalar_select %p59, %s60, %s61
      %p65 = pneg %p59
      %p66 = scmp.eq.s32.totalorder %s24, 1
      %p67 = por %p65, %p66
      %p68 = scmp.ne.s32.totalorder %s60, %s63
      %p69 = scmp.eq.s32.totalorder %s24, 0
      %p70 = por %p68, %p69
      %p71 = scmp.ne.s32.totalorder %s60, %s63
      %p72 = scmp.eq.s32.totalorder %s29, 1
      %p73 = por %p71, %p72
      %p74 = scmp.ne.s32.totalorder %s63, %s64
      %p75 = scmp.eq.s32.totalorder %s29, 0
      %p76 = por %p74, %p75
      %p77 = scmp.ne.s32.totalorder %s63, %s64
      %p78 = scmp.eq.s32.totalorder %s30, 1
      %p79 = por %p77, %p78
      %p81 = scmp.ne.s32.totalorder %s64, %s80
      %p82 = scmp.eq.s32.totalorder %s30, 0
      %p83 = por %p81, %p82
      %s85 = sadd.s32 %s84, 1
      %p88 = scmp.eq.s32.totalorder %s24, 1
      %p89 = scmp.ne.s32.totalorder %s84, %s86
      %p90 = scmp.eq.s32.totalorder %s24, 0
      %p91 = por %p89, %p90
      %p92 = scmp.ne.s32.totalorder %s84, %s86
      %p93 = scmp.eq.s32.totalorder %s29, 1
      %p94 = por %p92, %p93
      %p95 = scmp.ne.s32.totalorder %s86, %s87
      %p96 = scmp.eq.s32.totalorder %s29, 0
      %p97 = por %p95, %p96
      %p98 = scmp.ne.s32.totalorder %s86, %s87
      %p99 = scmp.eq.s32.totalorder %s30, 1
      %p100 = por %p98, %p99
      %p102 = scmp.ne.s32.totalorder %s87, %s101
      %p103 = scmp.eq.s32.totalorder %s30, 0
      %p104 = por %p102, %p103
      %s106 = sadd.s32 %s105, 1
      %p109 = scmp.eq.s32.totalorder %s24, 1
      %p110 = scmp.ne.s32.totalorder %s105, %s107
      %p111 = scmp.eq.s32.totalorder %s24, 0
      %p112 = por %p110, %p111
      %p113 = scmp.ne.s32.totalorder %s105, %s107
      %p114 = scmp.eq.s32.totalorder %s29, 1
      %p115 = por %p113, %p114
      %p116 = scmp.ne.s32.totalorder %s107, %s108
      %p117 = scmp.eq.s32.totalorder %s29, 0
      %p118 = por %p116, %p117
      %p119 = scmp.ne.s32.totalorder %s107, %s108
      %p120 = scmp.eq.s32.totalorder %s30, 1
      %p121 = por %p119, %p120
      %p123 = scmp.ne.s32.totalorder %s108, %s122
      %p124 = scmp.eq.s32.totalorder %s30, 0
      %p125 = por %p123, %p124
      %s127 = sadd.s32 %s126, 1
      %p130 = scmp.eq.s32.totalorder %s24, 1
      %p131 = scmp.ne.s32.totalorder %s126, %s128
      %p132 = scmp.eq.s32.totalorder %s24, 0
      %p133 = por %p131, %p132
      %p134 = scmp.ne.s32.totalorder %s126, %s128
      %p135 = scmp.eq.s32.totalorder %s29, 1
      %p136 = por %p134, %p135
      %p137 = scmp.ne.s32.totalorder %s128, %s129
      %p138 = scmp.eq.s32.totalorder %s29, 0
      %p139 = por %p137, %p138
      %p140 = scmp.ne.s32.totalorder %s128, %s129
      %p141 = scmp.eq.s32.totalorder %s30, 1
      %p142 = por %p140, %p141
      %p144 = scmp.ne.s32.totalorder %s129, %s143
      %p145 = scmp.eq.s32.totalorder %s30, 0
      %p146 = por %p144, %p145
      %s148 = sadd.s32 %s147, 1
      %p151 = scmp.eq.s32.totalorder %s24, 1
      %p152 = scmp.ne.s32.totalorder %s147, %s149
      %p153 = scmp.eq.s32.totalorder %s24, 0
      %p154 = por %p152, %p153
      %p155 = scmp.ne.s32.totalorder %s147, %s149
      %p156 = scmp.eq.s32.totalorder %s29, 1
      %p157 = por %p155, %p156
      %p158 = scmp.ne.s32.totalorder %s149, %s150
      %p159 = scmp.eq.s32.totalorder %s29, 0
      %p160 = por %p158, %p159
      %p161 = scmp.ne.s32.totalorder %s149, %s150
      %p162 = scmp.eq.s32.totalorder %s30, 1
      %p163 = por %p161, %p162
      %p165 = scmp.ne.s32.totalorder %s150, %s164
      %p166 = scmp.eq.s32.totalorder %s30, 0
      %p167 = por %p165, %p166
      %s169 = sadd.s32 %s168, 1
      %p172 = scmp.eq.s32.totalorder %s24, 1
      %p173 = scmp.ne.s32.totalorder %s168, %s170
      %p174 = scmp.eq.s32.totalorder %s24, 0
      %p175 = por %p173, %p174
      %p176 = scmp.ne.s32.totalorder %s168, %s170
      %p177 = scmp.eq.s32.totalorder %s29, 1
      %p178 = por %p176, %p177
      %p179 = scmp.ne.s32.totalorder %s170, %s171
      %p180 = scmp.eq.s32.totalorder %s29, 0
      %p181 = por %p179, %p180
      %p182 = scmp.ne.s32.totalorder %s170, %s171
      %p183 = scmp.eq.s32.totalorder %s30, 1
      %p184 = por %p182, %p183
      %p186 = scmp.ne.s32.totalorder %s171, %s185
      %p187 = scmp.eq.s32.totalorder %s30, 0
      %p188 = por %p186, %p187
      %s190 = sadd.s32 %s189, 1
      %p193 = scmp.eq.s32.totalorder %s24, 1
      %p194 = scmp.ne.s32.totalorder %s189, %s191
      %p195 = scmp.eq.s32.totalorder %s24, 0
      %p196 = por %p194, %p195
      %p197 = scmp.ne.s32.totalorder %s189, %s191
      %p198 = scmp.eq.s32.totalorder %s29, 1
      %p199 = por %p197, %p198
      %p200 = scmp.ne.s32.totalorder %s191, %s192
      %p201 = scmp.eq.s32.totalorder %s29, 0
      %p202 = por %p200, %p201
      %p203 = scmp.ne.s32.totalorder %s191, %s192
      %p204 = scmp.eq.s32.totalorder %s30, 1
      %p205 = por %p203, %p204
      %p207 = scmp.ne.s32.totalorder %s192, %s206
      %p208 = scmp.eq.s32.totalorder %s30, 0
      %p209 = por %p207, %p208
      %s210 = ssub.s32 %s24, %s31
      %p211 = scmp.eq.s32.totalorder %s210, 0
      %s213 = sadd.s32 %s212, 1
      %s214 = scalar_select %p211, %s212, %s213
      %p217 = pneg %p211
      %p218 = scmp.eq.s32.totalorder %s24, 1
      %p219 = por %p217, %p218
      %p220 = scmp.ne.s32.totalorder %s212, %s215
      %p221 = scmp.eq.s32.totalorder %s24, 0
      %p222 = por %p220, %p221
      %p223 = scmp.ne.s32.totalorder %s212, %s215
      %p224 = scmp.eq.s32.totalorder %s29, 1
      %p225 = por %p223, %p224
      %p226 = scmp.ne.s32.totalorder %s215, %s216
      %p227 = scmp.eq.s32.totalorder %s29, 0
      %p228 = por %p226, %p227
      %p229 = scmp.ne.s32.totalorder %s215, %s216
      %p230 = scmp.eq.s32.totalorder %s30, 1
      %p231 = por %p229, %p230
      %p233 = scmp.ne.s32.totalorder %s216, %s232
      %p234 = scmp.eq.s32.totalorder %s30, 0
      %p235 = por %p233, %p234
      %p236 = scmp.le.s32.totalorder 1, %s24
      %p237 = scmp.lt.s32.totalorder %s24, 3
      %p238 = pnand %p236, %p237
      %p239 = pneg %p238
      // Predicated region
      $region9: #{tpu_custom_call.1} parent=5 // pred_check
        _
      $region10: #{tpu_custom_call.1} parent=5 // pred_check_branch
        %241 = sbr.rel (%p238) target = $region12
      $region11: #{tpu_custom_call.1} parent=5 // pred_region
        %s242 = ssub.s32 %s24, 1
        // Predicated region
        $region13: #{tpu_custom_call.1} parent=11 // pred_check
          %p243 = pneg %p97
        $region14: #{tpu_custom_call.1} parent=11 // pred_check_branch
          %245 = sbr.rel (%p243) target = $region16
        $region15: #{tpu_custom_call.1} parent=11 // pred_region
          _
        $region16: #{tpu_custom_call.1} parent=11 // pred_fallthru
          _
        // Predicated region
        $region17: #{tpu_custom_call.1} parent=11 // pred_check
          %p246 = pneg %p118
        $region18: #{tpu_custom_call.1} parent=11 // pred_check_branch
          %248 = sbr.rel (%p246) target = $region20
        $region19: #{tpu_custom_call.1} parent=11 // pred_region
          _
        $region20: #{tpu_custom_call.1} parent=11 // pred_fallthru
          _
        // Predicated region
        $region21: #{tpu_custom_call.1} parent=11 // pred_check
          %p249 = pneg %p139
        $region22: #{tpu_custom_call.1} parent=11 // pred_check_branch
          %251 = sbr.rel (%p249) target = $region24
        $region23: #{tpu_custom_call.1} parent=11 // pred_region
          %s253 = ssub.s32 256, 256
          %254 = vsyncadd [#allocation8], %s253
          %s255 = sshll.u32 [#allocation9], 4
          %s256 = int_to_ptr.vmem [resolvable:$true] %s255
          %261 = dma.hbm_to_vmem [thread:$0]  %s4, 256, %s256, [#allocation8], 64, 64, 4
        $region24: #{tpu_custom_call.1} parent=11 // pred_fallthru
          _
        // Predicated region
        $region25: #{tpu_custom_call.1} parent=11 // pred_check
          %p262 = pneg %p160
        $region26: #{tpu_custom_call.1} parent=11 // pred_check_branch
          %264 = sbr.rel (%p262) target = $region28
        $region27: #{tpu_custom_call.1} parent=11 // pred_region
          _
        $region28: #{tpu_custom_call.1} parent=11 // pred_fallthru
          _
        // Predicated region
        $region29: #{tpu_custom_call.1} parent=11 // pred_check
          %p265 = pneg %p181
        $region30: #{tpu_custom_call.1} parent=11 // pred_check_branch
          %267 = sbr.rel (%p265) target = $region32
        $region31: #{tpu_custom_call.1} parent=11 // pred_region
          %s269 = ssub.s32 256, 256
          %270 = vsyncadd [#allocation11], %s269
          %s271 = sshll.u32 [#allocation10], 4
          %s272 = int_to_ptr.vmem [resolvable:$true] %s271
          %277 = dma.hbm_to_vmem [thread:$0]  %s6, 256, %s272, [#allocation11], 64, 64, 4
        $region32: #{tpu_custom_call.1} parent=11 // pred_fallthru
          _
        // Predicated region
        $region33: #{tpu_custom_call.1} parent=11 // pred_check
          %p278 = pneg %p202
        $region34: #{tpu_custom_call.1} parent=11 // pred_check_branch
          %280 = sbr.rel (%p278) target = $region36
        $region35: #{tpu_custom_call.1} parent=11 // pred_region
          _
        $region36: #{tpu_custom_call.1} parent=11 // pred_fallthru
          _
      $region12: #{tpu_custom_call.1} parent=5 // pred_fallthru
        _
      %p281 = scmp.lt.s32.totalorder %s24, 2
      // Predicated region
      $region37: #{tpu_custom_call.1} parent=5 // pred_check
        %p282 = pneg %p281
      $region38: #{tpu_custom_call.1} parent=5 // pred_check_branch
        %284 = sbr.rel (%p282) target = $region40
      $region39: #{tpu_custom_call.1} parent=5 // pred_region
        // Predicated region
        $region41: #{tpu_custom_call.1} parent=39 // pred_check
          %p285 = pneg %p44
        $region42: #{tpu_custom_call.1} parent=39 // pred_check_branch
          %287 = sbr.rel (%p285) target = $region44
        $region43: #{tpu_custom_call.1} parent=39 // pred_region
          %s288 = sand.u32 %s34, 1
          %s289 = scalar_lea.sflag [#allocation5], %s288
          %s290 = sand.u32 %s34, 1
          %s291 = smul.addr %s290, 16
          %s292 = scalar_lea.vmem [#allocation4], %s291
          %s294 = ssub.s32 256, 256
          %295 = vsyncadd %s289, %s294
          %s296 = smul.addr %s24, 2
          %s297 = smul.addr %s296, 128
          %s298 = scalar_lea.hbm %s0, %s297
          %s299 = sshll.u32 %s292, 4
          %s300 = int_to_ptr.vmem [resolvable:$true] %s299
          %305 = dma.hbm_to_vmem [thread:$0]  %s298, 256, %s300, %s289, 128, 128, 8
        $region44: #{tpu_custom_call.1} parent=39 // pred_fallthru
          _
        // Predicated region
        $region45: #{tpu_custom_call.1} parent=39 // pred_check
          %p306 = pneg %p70
        $region46: #{tpu_custom_call.1} parent=39 // pred_check_branch
          %308 = sbr.rel (%p306) target = $region48
        $region47: #{tpu_custom_call.1} parent=39 // pred_region
          %s309 = sand.u32 %s24, 1
          %s310 = scalar_lea.sflag [#allocation8], %s309
          %s311 = sand.u32 %s60, 1
          %s312 = smul.addr %s311, 16
          %s313 = scalar_lea.vmem [#allocation7], %s312
          %s315 = ssub.s32 256, 256
          %316 = vsyncadd %s310, %s315
          %s317 = smul.addr %s24, 2
          %s318 = smul.addr %s317, 128
          %s319 = scalar_lea.hbm %s1, %s318
          %s320 = sshll.u32 %s313, 4
          %s321 = int_to_ptr.vmem [resolvable:$true] %s320
          %326 = dma.hbm_to_vmem [thread:$0]  %s319, 256, %s321, %s310, 128, 128, 8
        $region48: #{tpu_custom_call.1} parent=39 // pred_fallthru
          _
      $region40: #{tpu_custom_call.1} parent=5 // pred_fallthru
        _
      %p327 = scmp.le.s32.totalorder 1, %s24
      %p328 = scmp.lt.s32.totalorder %s24, 3
      %p329 = pnand %p327, %p328
      %p330 = pneg %p329
      // Predicated region
      $region49: #{tpu_custom_call.1} parent=5 // pred_check
        _
      $region50: #{tpu_custom_call.1} parent=5 // pred_check_branch
        %332 = sbr.rel (%p329) target = $region52
      $region51: #{tpu_custom_call.1} parent=5 // pred_region
        %s333 = ssub.s32 %s24, 1
        %s334 = sand.u32 %s37, 1
        %s335 = scalar_lea.sflag [#allocation5], %s334
        %s336 = sand.u32 %s37, 1
        %s337 = smul.addr %s336, 16
        %s338 = scalar_lea.vmem [#allocation4], %s337
        // Predicated region
        $region53: #{tpu_custom_call.1} parent=51 // pred_check
          %p339 = pneg %p50
        $region54: #{tpu_custom_call.1} parent=51 // pred_check_branch
          %341 = sbr.rel (%p339) target = $region56
        $region55: #{tpu_custom_call.1} parent=51 // pred_region
          %342 = dma.done %s335, 256
        $region56: #{tpu_custom_call.1} parent=51 // pred_fallthru
          _
        %s343 = sand.u32 %s29, 1
        %s344 = scalar_lea.sflag [#allocation8], %s343
        %s345 = sand.u32 %s63, 1
        %s346 = smul.addr %s345, 16
        %s347 = scalar_lea.vmem [#allocation7], %s346
        // Predicated region
        $region57: #{tpu_custom_call.1} parent=51 // pred_check
          %p348 = pneg %p76
        $region58: #{tpu_custom_call.1} parent=51 // pred_check_branch
          %350 = sbr.rel (%p348) target = $region60
        $region59: #{tpu_custom_call.1} parent=51 // pred_region
          %351 = dma.done %s344, 256
        $region60: #{tpu_custom_call.1} parent=51 // pred_fallthru
          _
        // Predicated region
        $region61: #{tpu_custom_call.1} parent=51 // pred_check
          %p352 = pneg %p139
        $region62: #{tpu_custom_call.1} parent=51 // pred_check_branch
          %354 = sbr.rel (%p352) target = $region64
        $region63: #{tpu_custom_call.1} parent=51 // pred_region
          %355 = dma.done [#allocation8], 256
        $region64: #{tpu_custom_call.1} parent=51 // pred_fallthru
          _
        // Predicated region
        $region65: #{tpu_custom_call.1} parent=51 // pred_check
          %p356 = pneg %p181
        $region66: #{tpu_custom_call.1} parent=51 // pred_check_branch
          %358 = sbr.rel (%p356) target = $region68
        $region67: #{tpu_custom_call.1} parent=51 // pred_region
          %359 = dma.done [#allocation11], 256
        $region68: #{tpu_custom_call.1} parent=51 // pred_fallthru
          _
        %s360 = sand.u32 %s37, 1
        %s361 = scalar_lea.sflag [#allocation5], %s360
        %s362 = sand.u32 %s37, 1
        %s363 = smul.addr %s362, 16
        %s364 = scalar_lea.vmem [#allocation4], %s363
        %p365 = pneg %p50
        %p366 = pneg %p47
        %s367 = sand.u32 %s29, 1
        %s368 = scalar_lea.sflag [#allocation8], %s367
        %s369 = sand.u32 %s63, 1
        %s370 = smul.addr %s369, 16
        %s371 = scalar_lea.vmem [#allocation7], %s370
        %p372 = pneg %p76
        %p373 = pneg %p73
        %p374 = pneg %p97
        %p375 = pneg %p94
        %p376 = pneg %p118
        %p377 = pneg %p115
        %p378 = pneg %p139
        %p379 = pneg %p136
        %p380 = pneg %p160
        %p381 = pneg %p157
        %p382 = pneg %p181
        %p383 = pneg %p178
        %p384 = pneg %p202
        %p385 = pneg %p199
        %p386 = pneg %p228
        %p387 = pneg %p225
        %s388 = sand.u32 %s215, 1
        %s389 = scalar_lea.sflag [#allocation6], %s388
        %s390 = sand.u32 %s215, 1
        %s391 = smul.addr %s390, 16
        %s392 = scalar_lea.vmem [#allocation12], %s391
        %v394 = vld [vmem:[%s338] sm:$0xff]
        %v395 = vld [vmem:[%s338 + $0x8] sm:$0xff]
        %vm396 = vcmask 261120
        %v397 = vsel %vm396, %v394, 0.0
        %398 = vadd.xlane.f32.xlu0 %v397
        %v399 = vpop.xlane.xlu0 %398
        %v400 = vsel %vm396, %v395, 0.0
        %401 = vadd.xlane.f32.xlu0 %v400
        %v402 = vpop.xlane.xlu0 %401
        %v403 = vrcp.pop 32.0
        %v404 = vmul.f32 %v399, %v403
        %v405 = vmul.f32 %v402, %v403
        %v406 = vsub.f32 %v394, %v404
        %v407 = vsub.f32 %v395, %v405
        %v408 = vmul.f32 %v406, %v406
        %v409 = vmul.f32 %v407, %v407
        %v410 = vsel %vm396, %v408, 0.0
        %411 = vadd.xlane.f32.xlu0 %v410
        %v412 = vpop.xlane.xlu0 %411
        %v413 = vsel %vm396, %v409, 0.0
        %414 = vadd.xlane.f32.xlu0 %v413
        %v415 = vpop.xlane.xlu0 %414
        %v416 = vmul.f32 %v412, %v403
        %v417 = vmul.f32 %v415, %v403
        %v418 = vadd.f32 %v416, 1e-05
        %v419 = vadd.f32 %v417, 1e-05
        %v420 = vrsqrt.pop %v418
        %v421 = vrsqrt.pop %v419
        %v422 = vmul.f32 %v406, %v420
        %v423 = vmul.f32 %v407, %v421
        %v424 = vld [vmem:[%s2] sm:$0x1]
        %v426 = vlaneseq
        %v427 = vshrl.u32 %v426, 7
        %v428 = vsub.s32 0, %v427
        %v429 = vrot.slane %v424, %v428
        %v431 = vmul.f32 %v422, %v429
        %v432 = vmul.f32 %v423, %v429
        %v433 = vld [vmem:[%s3] sm:$0x1]
        %v435 = vlaneseq
        %v436 = vshrl.u32 %v435, 7
        %v437 = vsub.s32 0, %v436
        %v438 = vrot.slane %v433, %v437
        %v440 = vadd.f32 %v431, %v438
        %v441 = vadd.f32 %v432, %v438
        %v442 = vpack.c.bf16 %v441, %v440
        %v443 = vld [vmem:[#allocation9] sm:$0xf]
        %v444 = vld [vmem:[#allocation9 + $0x4] sm:$0xf]
        %v445 = vld [vmem:[#allocation9 + $0x8] sm:$0xf]
        %v446 = vld [vmem:[#allocation9 + $0xc] sm:$0xf]
        %v451 = vunpack.c.l.b16 %v443
        %v452 = vunpack.c.l.b16 %v444
        %v453 = vunpack.c.l.b16 %v445
        %v454 = vunpack.c.l.b16 %v446
        %v455 = vpack.c.b16 %v452, %v451
        %v456 = vpack.c.b16 %v454, %v453
        %v460 = vsel %vm396, %v442, 0
        %462 = vmatprep.subr.bf16.mxu0 0
        %463 = vmatpush1.bf16.msra.mxu0 %v455
        %464 = vmatprep.subr.bf16.mxu0 0
        %465 = vmatpush1.bf16.msra.mxu0 %v456
        %466 = vmatprep.subr.bf16.mxu0 0
        %467 = vmatpush1.bf16.msra.mxu0 0
        %468 = vmatprep.subr.bf16.mxu0 0
        %469 = vmatpush1.bf16.msra.mxu0 0
        %470 = vmatprep.subr.bf16.mxu0 0
        %471 = vmatpush1.bf16.msra.mxu0 0
        %472 = vmatprep.subr.bf16.mxu0 0
        %473 = vmatpush1.bf16.msra.mxu0 0
        %474 = vmatprep.subr.bf16.mxu0 0
        %475 = vmatpush1.bf16.msra.mxu0 0
        %476 = vmatprep.subr.bf16.mxu0 0
        %477 = vmatpush1.bf16.msra.mxu0 0
        %478 = vmatprep.subr.bf16.mxu0 0
        %479 = vmatpush1.bf16.msra.mxu0 0
        %480 = vmatprep.subr.bf16.mxu0 0
        %481 = vmatpush1.bf16.msra.mxu0 0
        %482 = vmatprep.subr.bf16.mxu0 0
        %483 = vmatpush1.bf16.msra.mxu0 0
        %484 = vmatprep.subr.bf16.mxu0 0
        %485 = vmatpush1.bf16.msra.mxu0 0
        %486 = vmatprep.subr.bf16.mxu0 0
        %487 = vmatpush1.bf16.msra.mxu0 0
        %488 = vmatprep.subr.bf16.mxu0 0
        %489 = vmatpush1.bf16.msra.mxu0 0
        %490 = vmatprep.subr.bf16.mxu0 0
        %491 = vmatpush1.bf16.msra.mxu0 0
        %492 = vmatprep.subr.bf16.mxu0 0
        %493 = vmatpush1.bf16.msra.mxu0 0
        %494 = vmatprep.mubr.bf16.mxu0 0
        %495 = vmatmul.mubr.bf16.gmra.mrb[0].mxu0 %v460
        %v496 = vpop.f32.mrb[0].mxu0
        %v497 = vadd.f32 0.0, %v496
        %v498 = vpop.f32.mrb[0].mxu0
        %v499 = vpop.f32.mrb[0].mxu0
        %v500 = vadd.f32 0.0, %v499
        %v501 = vpop.f32.mrb[0].mxu0
        %502 = vdwg.mxu0
        %503 = vst.msk [vmem:[#allocation2] sm:$0xff] %vm396, %v497
        %504 = vst.msk [vmem:[#allocation2 + $0x8] sm:$0xff] %vm396, %v500
        %v505 = vld [vmem:[%s347] sm:$0xff]
        %v506 = vld [vmem:[%s347 + $0x8] sm:$0xff]
        %v507 = vpack.c.bf16 %v506, %v505
        %v508 = vld [vmem:[%s5] sm:$0xf]
        %v509 = vld [vmem:[%s5 + $0x4] sm:$0xf]
        %v510 = vld [vmem:[%s5 + $0x8] sm:$0xf]
        %v511 = vld [vmem:[%s5 + $0xc] sm:$0xf]
        %v516 = vunpack.c.l.b16 %v508
        %v517 = vunpack.c.l.b16 %v509
        %v518 = vunpack.c.l.b16 %v510
        %v519 = vunpack.c.l.b16 %v511
        %v520 = vpack.c.b16 %v517, %v516
        %v521 = vpack.c.b16 %v519, %v518
        %v525 = vsel %vm396, %v507, 0
        %527 = vmatprep.subr.bf16.mxu0 0
        %528 = vmatpush1.bf16.msra.mxu0 %v520
        %529 = vmatprep.subr.bf16.mxu0 0
        %530 = vmatpush1.bf16.msra.mxu0 %v521
        %531 = vmatprep.subr.bf16.mxu0 0
        %532 = vmatpush1.bf16.msra.mxu0 0
        %533 = vmatprep.subr.bf16.mxu0 0
        %534 = vmatpush1.bf16.msra.mxu0 0
        %535 = vmatprep.subr.bf16.mxu0 0
        %536 = vmatpush1.bf16.msra.mxu0 0
        %537 = vmatprep.subr.bf16.mxu0 0
        %538 = vmatpush1.bf16.msra.mxu0 0
        %539 = vmatprep.subr.bf16.mxu0 0
        %540 = vmatpush1.bf16.msra.mxu0 0
        %541 = vmatprep.subr.bf16.mxu0 0
        %542 = vmatpush1.bf16.msra.mxu0 0
        %543 = vmatprep.subr.bf16.mxu0 0
        %544 = vmatpush1.bf16.msra.mxu0 0
        %545 = vmatprep.subr.bf16.mxu0 0
        %546 = vmatpush1.bf16.msra.mxu0 0
        %547 = vmatprep.subr.bf16.mxu0 0
        %548 = vmatpush1.bf16.msra.mxu0 0
        %549 = vmatprep.subr.bf16.mxu0 0
        %550 = vmatpush1.bf16.msra.mxu0 0
        %551 = vmatprep.subr.bf16.mxu0 0
        %552 = vmatpush1.bf16.msra.mxu0 0
        %553 = vmatprep.subr.bf16.mxu0 0
        %554 = vmatpush1.bf16.msra.mxu0 0
        %555 = vmatprep.subr.bf16.mxu0 0
        %556 = vmatpush1.bf16.msra.mxu0 0
        %557 = vmatprep.subr.bf16.mxu0 0
        %558 = vmatpush1.bf16.msra.mxu0 0
        %559 = vmatprep.mubr.bf16.mxu0 0
        %560 = vmatmul.mubr.bf16.gmra.mrb[0].mxu0 %v525
        %v561 = vpop.f32.mrb[0].mxu0
        %v562 = vadd.f32 0.0, %v561
        %v563 = vpop.f32.mrb[0].mxu0
        %v564 = vpop.f32.mrb[0].mxu0
        %v565 = vadd.f32 0.0, %v564
        %v566 = vpop.f32.mrb[0].mxu0
        %567 = vdwg.mxu0
        %vm568 = vcmask 523264
        %569 = vst.msk [vmem:[#allocation3] sm:$0xff] %vm568, %v562
        %570 = vst.msk [vmem:[#allocation3 + $0x8] sm:$0xff] %vm568, %v565
        %v571 = vld [vmem:[#allocation2] sm:$0xff]
        %v572 = vld [vmem:[#allocation2 + $0x8] sm:$0xff]
        %v573 = vmul.f32 %v571, 0.35355338
        %v574 = vmul.f32 %v572, 0.35355338
        %v575 = vpack.c.bf16 %v574, %v573
        %v576 = vld [vmem:[#allocation3] sm:$0xff]
        %v577 = vpack.c.bf16 %v576, %v576
        %v578 = vld [vmem:[#allocation3 + $0x8] sm:$0xff]
        %v579 = vpack.c.bf16 %v578, %v578
        %vm580 = vcmask 64512
        %v582 = vsel %vm580, %v575, 0
        %v585 = vsel %vm580, %v577, 0
        %587 = vmatprep.subr.bf16.mxu0 0
        %588 = vmatpush1.bf16.xpose.msra.mxu0 %v585
        %589 = vmatprep.subr.bf16.mxu0 0
        %590 = vmatpush1.bf16.xpose.msra.mxu0 0
        %591 = vmatprep.subr.bf16.mxu0 0
        %592 = vmatpush1.bf16.xpose.msra.mxu0 0
        %593 = vmatprep.subr.bf16.mxu0 0
        %594 = vmatpush1.bf16.xpose.msra.mxu0 0
        %595 = vmatprep.subr.bf16.mxu0 0
        %596 = vmatpush1.bf16.xpose.msra.mxu0 0
        %597 = vmatprep.subr.bf16.mxu0 0
        %598 = vmatpush1.bf16.xpose.msra.mxu0 0
        %599 = vmatprep.subr.bf16.mxu0 0
        %600 = vmatpush1.bf16.xpose.msra.mxu0 0
        %601 = vmatprep.subr.bf16.mxu0 0
        %602 = vmatpush1.bf16.xpose.msra.mxu0 0
        %603 = vmatprep.subr.bf16.mxu0 0
        %604 = vmatpush1.bf16.xpose.msra.mxu0 0
        %605 = vmatprep.subr.bf16.mxu0 0
        %606 = vmatpush1.bf16.xpose.msra.mxu0 0
        %607 = vmatprep.subr.bf16.mxu0 0
        %608 = vmatpush1.bf16.xpose.msra.mxu0 0
        %609 = vmatprep.subr.bf16.mxu0 0
        %610 = vmatpush1.bf16.xpose.msra.mxu0 0
        %611 = vmatprep.subr.bf16.mxu0 0
        %612 = vmatpush1.bf16.xpose.msra.mxu0 0
        %613 = vmatprep.subr.bf16.mxu0 0
        %614 = vmatpush1.bf16.xpose.msra.mxu0 0
        %615 = vmatprep.subr.bf16.mxu0 0
        %616 = vmatpush1.bf16.xpose.msra.mxu0 0
        %617 = vmatprep.subr.bf16.mxu0 0
        %618 = vmatpush1.bf16.xpose.msra.mxu0 0
        %619 = vmatprep.mubr.bf16.mxu0 0
        %620 = vmatmul.mubr.bf16.gmra.mrb[0].mxu0 %v582
        %v621 = vpop.f32.mrb[0].mxu0
        %v622 = vadd.f32 0.0, %v621
        %v623 = vpop.f32.mrb[0].mxu0
        %v624 = vpop.f32.mrb[0].mxu0
        %v625 = vadd.f32 0.0, %v624
        %v626 = vpop.f32.mrb[0].mxu0
        %627 = vdwg.mxu0
        %629 = vrot.lane.b32.xlu0 %v577, 96
        %v630 = vpop.permute.xlu0 %629
        %v632 = vsel %vm580, %v630, 0
        %634 = vmatprep.subr.bf16.mxu0 0
        %635 = vmatpush1.bf16.xpose.msra.mxu0 %v632
        %636 = vmatprep.subr.bf16.mxu0 0
        %637 = vmatpush1.bf16.xpose.msra.mxu0 0
        %638 = vmatprep.subr.bf16.mxu0 0
        %639 = vmatpush1.bf16.xpose.msra.mxu0 0
        %640 = vmatprep.subr.bf16.mxu0 0
        %641 = vmatpush1.bf16.xpose.msra.mxu0 0
        %642 = vmatprep.subr.bf16.mxu0 0
        %643 = vmatpush1.bf16.xpose.msra.mxu0 0
        %644 = vmatprep.subr.bf16.mxu0 0
        %645 = vmatpush1.bf16.xpose.msra.mxu0 0
        %646 = vmatprep.subr.bf16.mxu0 0
        %647 = vmatpush1.bf16.xpose.msra.mxu0 0
        %648 = vmatprep.subr.bf16.mxu0 0
        %649 = vmatpush1.bf16.xpose.msra.mxu0 0
        %650 = vmatprep.subr.bf16.mxu0 0
        %651 = vmatpush1.bf16.xpose.msra.mxu0 0
        %652 = vmatprep.subr.bf16.mxu0 0
        %653 = vmatpush1.bf16.xpose.msra.mxu0 0
        %654 = vmatprep.subr.bf16.mxu0 0
        %655 = vmatpush1.bf16.xpose.msra.mxu0 0
        %656 = vmatprep.subr.bf16.mxu0 0
        %657 = vmatpush1.bf16.xpose.msra.mxu0 0
        %658 = vmatprep.subr.bf16.mxu0 0
        %659 = vmatpush1.bf16.xpose.msra.mxu0 0
        %660 = vmatprep.subr.bf16.mxu0 0
        %661 = vmatpush1.bf16.xpose.msra.mxu0 0
        %662 = vmatprep.subr.bf16.mxu0 0
        %663 = vmatpush1.bf16.xpose.msra.mxu0 0
        %664 = vmatprep.subr.bf16.mxu0 0
        %665 = vmatpush1.bf16.xpose.msra.mxu0 0
        %666 = vmatprep.mubr.bf16.mxu0 0
        %667 = vmatmul.mubr.bf16.gmra.mrb[0].mxu0 %v582
        %v668 = vpop.f32.mrb[0].mxu0
        %v669 = vadd.f32 0.0, %v668
        %v670 = vpop.f32.mrb[0].mxu0
        %v671 = vpop.f32.mrb[0].mxu0
        %v672 = vadd.f32 0.0, %v671
        %v673 = vpop.f32.mrb[0].mxu0
        %674 = vdwg.mxu0
        %v675 = vsel %vm580, %v622, -inf
        %676 = vmax.xlane.f32.xlu0 %v675
        %v677 = vpop.xlane.xlu0 %676
        %v678 = vsel %vm580, %v625, -inf
        %679 = vmax.xlane.f32.xlu0 %v678
        %v680 = vpop.xlane.xlu0 %679
        %v681 = vsel %vm580, %v669, -inf
        %682 = vmax.xlane.f32.xlu0 %v681
        %v683 = vpop.xlane.xlu0 %682
        %v684 = vsel %vm580, %v672, -inf
        %685 = vmax.xlane.f32.xlu0 %v684
        %v686 = vpop.xlane.xlu0 %685
        %v687 = vmax.f32 %v677, %v683
        %v688 = vmax.f32 %v680, %v686
        %v689 = vsub.f32 %v622, %v687
        %v690 = vsub.f32 %v625, %v688
        %v691 = vmul.f32 %v689, 1.442695
        %v692 = vpow.pop %v691
        %v693 = vmul.f32 %v690, 1.442695
        %v694 = vpow.pop %v693
        %v695 = vsub.f32 %v669, %v687
        %v696 = vsub.f32 %v672, %v688
        %v697 = vmul.f32 %v695, 1.442695
        %v698 = vpow.pop %v697
        %v699 = vmul.f32 %v696, 1.442695
        %v700 = vpow.pop %v699
        %v701 = vsel %vm580, %v692, 0.0
        %702 = vadd.xlane.f32.xlu0 %v701
        %v703 = vpop.xlane.xlu0 %702
        %v704 = vsel %vm580, %v694, 0.0
        %705 = vadd.xlane.f32.xlu0 %v704
        %v706 = vpop.xlane.xlu0 %705
        %v707 = vsel %vm580, %v698, 0.0
        %708 = vadd.xlane.f32.xlu0 %v707
        %v709 = vpop.xlane.xlu0 %708
        %v710 = vsel %vm580, %v700, 0.0
        %711 = vadd.xlane.f32.xlu0 %v710
        %v712 = vpop.xlane.xlu0 %711
        %v713 = vadd.f32 %v703, %v709
        %v714 = vadd.f32 %v706, %v712
        %v715 = vrcp.pop %v713
        %v716 = vrcp.pop %v714
        %v717 = vpack.c.bf16 %v694, %v692
        %v718 = vpack.c.bf16 %v700, %v698
        %720 = vrot.lane.b32.xlu0 %v579, 96
        %v721 = vpop.permute.xlu0 %720
        %v723 = vsel %vm580, %v718, 0
        %vm725 = vcmask 1043456
        %v727 = vsel %vm725, %v721, 0
        %729 = vmatprep.subr.bf16.mxu0 0
        %730 = vmatpush1.bf16.msra.mxu0 %v727
        %731 = vmatprep.subr.bf16.mxu0 0
        %732 = vmatpush1.bf16.msra.mxu0 0
        %733 = vmatprep.subr.bf16.mxu0 0
        %734 = vmatpush1.bf16.msra.mxu0 0
        %735 = vmatprep.subr.bf16.mxu0 0
        %736 = vmatpush1.bf16.msra.mxu0 0
        %737 = vmatprep.subr.bf16.mxu0 0
        %738 = vmatpush1.bf16.msra.mxu0 0
        %739 = vmatprep.subr.bf16.mxu0 0
        %740 = vmatpush1.bf16.msra.mxu0 0
        %741 = vmatprep.subr.bf16.mxu0 0
        %742 = vmatpush1.bf16.msra.mxu0 0
        %743 = vmatprep.subr.bf16.mxu0 0
        %744 = vmatpush1.bf16.msra.mxu0 0
        %745 = vmatprep.subr.bf16.mxu0 0
        %746 = vmatpush1.bf16.msra.mxu0 0
        %747 = vmatprep.subr.bf16.mxu0 0
        %748 = vmatpush1.bf16.msra.mxu0 0
        %749 = vmatprep.subr.bf16.mxu0 0
        %750 = vmatpush1.bf16.msra.mxu0 0
        %751 = vmatprep.subr.bf16.mxu0 0
        %752 = vmatpush1.bf16.msra.mxu0 0
        %753 = vmatprep.subr.bf16.mxu0 0
        %754 = vmatpush1.bf16.msra.mxu0 0
        %755 = vmatprep.subr.bf16.mxu0 0
        %756 = vmatpush1.bf16.msra.mxu0 0
        %757 = vmatprep.subr.bf16.mxu0 0
        %758 = vmatpush1.bf16.msra.mxu0 0
        %759 = vmatprep.subr.bf16.mxu0 0
        %760 = vmatpush1.bf16.msra.mxu0 0
        %761 = vmatprep.mubr.bf16.mxu0 0
        %762 = vmatmul.mubr.bf16.gmra.mrb[0].mxu0 %v723
        %v763 = vpop.f32.mrb[0].mxu0
        %v764 = vadd.f32 0.0, %v763
        %v765 = vpop.f32.mrb[0].mxu0
        %v766 = vpop.f32.mrb[0].mxu0
        %v767 = vadd.f32 0.0, %v766
        %v768 = vpop.f32.mrb[0].mxu0
        %769 = vdwg.mxu0
        %v771 = vsel %vm580, %v717, 0
        %v774 = vsel %vm725, %v579, 0
        %776 = vmatprep.subr.bf16.mxu0 0
        %777 = vmatpush1.bf16.msra.mxu0 %v774
        %778 = vmatprep.subr.bf16.mxu0 0
        %779 = vmatpush1.bf16.msra.mxu0 0
        %780 = vmatprep.subr.bf16.mxu0 0
        %781 = vmatpush1.bf16.msra.mxu0 0
        %782 = vmatprep.subr.bf16.mxu0 0
        %783 = vmatpush1.bf16.msra.mxu0 0
        %784 = vmatprep.subr.bf16.mxu0 0
        %785 = vmatpush1.bf16.msra.mxu0 0
        %786 = vmatprep.subr.bf16.mxu0 0
        %787 = vmatpush1.bf16.msra.mxu0 0
        %788 = vmatprep.subr.bf16.mxu0 0
        %789 = vmatpush1.bf16.msra.mxu0 0
        %790 = vmatprep.subr.bf16.mxu0 0
        %791 = vmatpush1.bf16.msra.mxu0 0
        %792 = vmatprep.subr.bf16.mxu0 0
        %793 = vmatpush1.bf16.msra.mxu0 0
        %794 = vmatprep.subr.bf16.mxu0 0
        %795 = vmatpush1.bf16.msra.mxu0 0
        %796 = vmatprep.subr.bf16.mxu0 0
        %797 = vmatpush1.bf16.msra.mxu0 0
        %798 = vmatprep.subr.bf16.mxu0 0
        %799 = vmatpush1.bf16.msra.mxu0 0
        %800 = vmatprep.subr.bf16.mxu0 0
        %801 = vmatpush1.bf16.msra.mxu0 0
        %802 = vmatprep.subr.bf16.mxu0 0
        %803 = vmatpush1.bf16.msra.mxu0 0
        %804 = vmatprep.subr.bf16.mxu0 0
        %805 = vmatpush1.bf16.msra.mxu0 0
        %806 = vmatprep.subr.bf16.mxu0 0
        %807 = vmatpush1.bf16.msra.mxu0 0
        %808 = vmatprep.mubr.bf16.mxu0 0
        %809 = vmatmul.mubr.bf16.gmra.mrb[0].mxu0 %v771
        %v810 = vpop.f32.mrb[0].mxu0
        %v811 = vadd.f32 %v764, %v810
        %v812 = vpop.f32.mrb[0].mxu0
        %v813 = vpop.f32.mrb[0].mxu0
        %v814 = vadd.f32 %v767, %v813
        %v815 = vpop.f32.mrb[0].mxu0
        %816 = vdwg.mxu0
        %v817 = vmul.f32 %v811, %v715
        %v818 = vmul.f32 %v814, %v716
        %v819 = vpack.c.bf16 %v818, %v817
        %v820 = vld [vmem:[#allocation10] sm:$0xf]
        %822 = vrot.lane.b32.xlu0 %v575, 120
        %v823 = vpop.permute.xlu0 %822
        %824 = vrot.lane.b32.xlu0 %v577, 120
        %v825 = vpop.permute.xlu0 %824
        %v827 = vsel %vm580, %v823, 0
        %v830 = vsel %vm580, %v825, 0
        %832 = vmatprep.subr.bf16.mxu0 0
        %833 = vmatpush1.bf16.xpose.msra.mxu0 %v830
        %834 = vmatprep.subr.bf16.mxu0 0
        %835 = vmatpush1.bf16.xpose.msra.mxu0 0
        %836 = vmatprep.subr.bf16.mxu0 0
        %837 = vmatpush1.bf16.xpose.msra.mxu0 0
        %838 = vmatprep.subr.bf16.mxu0 0
        %839 = vmatpush1.bf16.xpose.msra.mxu0 0
        %840 = vmatprep.subr.bf16.mxu0 0
        %841 = vmatpush1.bf16.xpose.msra.mxu0 0
        %842 = vmatprep.subr.bf16.mxu0 0
        %843 = vmatpush1.bf16.xpose.msra.mxu0 0
        %844 = vmatprep.subr.bf16.mxu0 0
        %845 = vmatpush1.bf16.xpose.msra.mxu0 0
        %846 = vmatprep.subr.bf16.mxu0 0
        %847 = vmatpush1.bf16.xpose.msra.mxu0 0
        %848 = vmatprep.subr.bf16.mxu0 0
        %849 = vmatpush1.bf16.xpose.msra.mxu0 0
        %850 = vmatprep.subr.bf16.mxu0 0
        %851 = vmatpush1.bf16.xpose.msra.mxu0 0
        %852 = vmatprep.subr.bf16.mxu0 0
        %853 = vmatpush1.bf16.xpose.msra.mxu0 0
        %854 = vmatprep.subr.bf16.mxu0 0
        %855 = vmatpush1.bf16.xpose.msra.mxu0 0
        %856 = vmatprep.subr.bf16.mxu0 0
        %857 = vmatpush1.bf16.xpose.msra.mxu0 0
        %858 = vmatprep.subr.bf16.mxu0 0
        %859 = vmatpush1.bf16.xpose.msra.mxu0 0
        %860 = vmatprep.subr.bf16.mxu0 0
        %861 = vmatpush1.bf16.xpose.msra.mxu0 0
        %862 = vmatprep.subr.bf16.mxu0 0
        %863 = vmatpush1.bf16.xpose.msra.mxu0 0
        %864 = vmatprep.mubr.bf16.mxu0 0
        %865 = vmatmul.mubr.bf16.gmra.mrb[0].mxu0 %v827
        %v866 = vpop.f32.mrb[0].mxu0
        %v867 = vadd.f32 0.0, %v866
        %v868 = vpop.f32.mrb[0].mxu0
        %v869 = vpop.f32.mrb[0].mxu0
        %v870 = vadd.f32 0.0, %v869
        %v871 = vpop.f32.mrb[0].mxu0
        %872 = vdwg.mxu0
        %873 = vrot.lane.b32.xlu0 %v577, 88
        %v874 = vpop.permute.xlu0 %873
        %v876 = vsel %vm580, %v874, 0
        %878 = vmatprep.subr.bf16.mxu0 0
        %879 = vmatpush1.bf16.xpose.msra.mxu0 %v876
        %880 = vmatprep.subr.bf16.mxu0 0
        %881 = vmatpush1.bf16.xpose.msra.mxu0 0
        %882 = vmatprep.subr.bf16.mxu0 0
        %883 = vmatpush1.bf16.xpose.msra.mxu0 0
        %884 = vmatprep.subr.bf16.mxu0 0
        %885 = vmatpush1.bf16.xpose.msra.mxu0 0
        %886 = vmatprep.subr.bf16.mxu0 0
        %887 = vmatpush1.bf16.xpose.msra.mxu0 0
        %888 = vmatprep.subr.bf16.mxu0 0
        %889 = vmatpush1.bf16.xpose.msra.mxu0 0
        %890 = vmatprep.subr.bf16.mxu0 0
        %891 = vmatpush1.bf16.xpose.msra.mxu0 0
        %892 = vmatprep.subr.bf16.mxu0 0
        %893 = vmatpush1.bf16.xpose.msra.mxu0 0
        %894 = vmatprep.subr.bf16.mxu0 0
        %895 = vmatpush1.bf16.xpose.msra.mxu0 0
        %896 = vmatprep.subr.bf16.mxu0 0
        %897 = vmatpush1.bf16.xpose.msra.mxu0 0
        %898 = vmatprep.subr.bf16.mxu0 0
        %899 = vmatpush1.bf16.xpose.msra.mxu0 0
        %900 = vmatprep.subr.bf16.mxu0 0
        %901 = vmatpush1.bf16.xpose.msra.mxu0 0
        %902 = vmatprep.subr.bf16.mxu0 0
        %903 = vmatpush1.bf16.xpose.msra.mxu0 0
        %904 = vmatprep.subr.bf16.mxu0 0
        %905 = vmatpush1.bf16.xpose.msra.mxu0 0
        %906 = vmatprep.subr.bf16.mxu0 0
        %907 = vmatpush1.bf16.xpose.msra.mxu0 0
        %908 = vmatprep.subr.bf16.mxu0 0
        %909 = vmatpush1.bf16.xpose.msra.mxu0 0
        %910 = vmatprep.mubr.bf16.mxu0 0
        %911 = vmatmul.mubr.bf16.gmra.mrb[0].mxu0 %v827
        %v912 = vpop.f32.mrb[0].mxu0
        %v913 = vadd.f32 0.0, %v912
        %v914 = vpop.f32.mrb[0].mxu0
        %v915 = vpop.f32.mrb[0].mxu0
        %v916 = vadd.f32 0.0, %v915
        %v917 = vpop.f32.mrb[0].mxu0
        %918 = vdwg.mxu0
        %v919 = vsel %vm580, %v867, -inf
        %920 = vmax.xlane.f32.xlu0 %v919
        %v921 = vpop.xlane.xlu0 %920
        %v922 = vsel %vm580, %v870, -inf
        %923 = vmax.xlane.f32.xlu0 %v922
        %v924 = vpop.xlane.xlu0 %923
        %v925 = vsel %vm580, %v913, -inf
        %926 = vmax.xlane.f32.xlu0 %v925
        %v927 = vpop.xlane.xlu0 %926
        %v928 = vsel %vm580, %v916, -inf
        %929 = vmax.xlane.f32.xlu0 %v928
        %v930 = vpop.xlane.xlu0 %929
        %v931 = vmax.f32 %v921, %v927
        %v932 = vmax.f32 %v924, %v930
        %v933 = vsub.f32 %v867, %v931
        %v934 = vsub.f32 %v870, %v932
        %v935 = vmul.f32 %v933, 1.442695
        %v936 = vpow.pop %v935
        %v937 = vmul.f32 %v934, 1.442695
        %v938 = vpow.pop %v937
        %v939 = vsub.f32 %v913, %v931
        %v940 = vsub.f32 %v916, %v932
        %v941 = vmul.f32 %v939, 1.442695
        %v942 = vpow.pop %v941
        %v943 = vmul.f32 %v940, 1.442695
        %v944 = vpow.pop %v943
        %v945 = vsel %vm580, %v936, 0.0
        %946 = vadd.xlane.f32.xlu0 %v945
        %v947 = vpop.xlane.xlu0 %946
        %v948 = vsel %vm580, %v938, 0.0
        %949 = vadd.xlane.f32.xlu0 %v948
        %v950 = vpop.xlane.xlu0 %949
        %v951 = vsel %vm580, %v942, 0.0
        %952 = vadd.xlane.f32.xlu0 %v951
        %v953 = vpop.xlane.xlu0 %952
        %v954 = vsel %vm580, %v944, 0.0
        %955 = vadd.xlane.f32.xlu0 %v954
        %v956 = vpop.xlane.xlu0 %955
        %v957 = vadd.f32 %v947, %v953
        %v958 = vadd.f32 %v950, %v956
        %v959 = vrcp.pop %v957
        %v960 = vrcp.pop %v958
        %v961 = vpack.c.bf16 %v938, %v936
        %v962 = vpack.c.bf16 %v944, %v942
        %963 = vrot.lane.b32.xlu0 %v579, 88
        %v964 = vpop.permute.xlu0 %963
        %v966 = vsel %vm580, %v962, 0
        %v969 = vsel %vm725, %v964, 0
        %971 = vmatprep.subr.bf16.mxu0 0
        %972 = vmatpush1.bf16.msra.mxu0 %v969
        %973 = vmatprep.subr.bf16.mxu0 0
        %974 = vmatpush1.bf16.msra.mxu0 0
        %975 = vmatprep.subr.bf16.mxu0 0
        %976 = vmatpush1.bf16.msra.mxu0 0
        %977 = vmatprep.subr.bf16.mxu0 0
        %978 = vmatpush1.bf16.msra.mxu0 0
        %979 = vmatprep.subr.bf16.mxu0 0
        %980 = vmatpush1.bf16.msra.mxu0 0
        %981 = vmatprep.subr.bf16.mxu0 0
        %982 = vmatpush1.bf16.msra.mxu0 0
        %983 = vmatprep.subr.bf16.mxu0 0
        %984 = vmatpush1.bf16.msra.mxu0 0
        %985 = vmatprep.subr.bf16.mxu0 0
        %986 = vmatpush1.bf16.msra.mxu0 0
        %987 = vmatprep.subr.bf16.mxu0 0
        %988 = vmatpush1.bf16.msra.mxu0 0
        %989 = vmatprep.subr.bf16.mxu0 0
        %990 = vmatpush1.bf16.msra.mxu0 0
        %991 = vmatprep.subr.bf16.mxu0 0
        %992 = vmatpush1.bf16.msra.mxu0 0
        %993 = vmatprep.subr.bf16.mxu0 0
        %994 = vmatpush1.bf16.msra.mxu0 0
        %995 = vmatprep.subr.bf16.mxu0 0
        %996 = vmatpush1.bf16.msra.mxu0 0
        %997 = vmatprep.subr.bf16.mxu0 0
        %998 = vmatpush1.bf16.msra.mxu0 0
        %999 = vmatprep.subr.bf16.mxu0 0
        %1000 = vmatpush1.bf16.msra.mxu0 0
        %1001 = vmatprep.subr.bf16.mxu0 0
        %1002 = vmatpush1.bf16.msra.mxu0 0
        %1003 = vmatprep.mubr.bf16.mxu0 0
        %1004 = vmatmul.mubr.bf16.gmra.mrb[0].mxu0 %v966
        %v1005 = vpop.f32.mrb[0].mxu0
        %v1006 = vadd.f32 0.0, %v1005
        %v1007 = vpop.f32.mrb[0].mxu0
        %v1008 = vpop.f32.mrb[0].mxu0
        %v1009 = vadd.f32 0.0, %v1008
        %v1010 = vpop.f32.mrb[0].mxu0
        %1011 = vdwg.mxu0
        %1012 = vrot.lane.b32.xlu0 %v579, 120
        %v1013 = vpop.permute.xlu0 %1012
        %v1015 = vsel %vm580, %v961, 0
        %v1018 = vsel %vm725, %v1013, 0
        %1020 = vmatprep.subr.bf16.mxu0 0
        %1021 = vmatpush1.bf16.msra.mxu0 %v1018
        %1022 = vmatprep.subr.bf16.mxu0 0
        %1023 = vmatpush1.bf16.msra.mxu0 0
        %1024 = vmatprep.subr.bf16.mxu0 0
        %1025 = vmatpush1.bf16.msra.mxu0 0
        %1026 = vmatprep.subr.bf16.mxu0 0
        %1027 = vmatpush1.bf16.msra.mxu0 0
        %1028 = vmatprep.subr.bf16.mxu0 0
        %1029 = vmatpush1.bf16.msra.mxu0 0
        %1030 = vmatprep.subr.bf16.mxu0 0
        %1031 = vmatpush1.bf16.msra.mxu0 0
        %1032 = vmatprep.subr.bf16.mxu0 0
        %1033 = vmatpush1.bf16.msra.mxu0 0
        %1034 = vmatprep.subr.bf16.mxu0 0
        %1035 = vmatpush1.bf16.msra.mxu0 0
        %1036 = vmatprep.subr.bf16.mxu0 0
        %1037 = vmatpush1.bf16.msra.mxu0 0
        %1038 = vmatprep.subr.bf16.mxu0 0
        %1039 = vmatpush1.bf16.msra.mxu0 0
        %1040 = vmatprep.subr.bf16.mxu0 0
        %1041 = vmatpush1.bf16.msra.mxu0 0
        %1042 = vmatprep.subr.bf16.mxu0 0
        %1043 = vmatpush1.bf16.msra.mxu0 0
        %1044 = vmatprep.subr.bf16.mxu0 0
        %1045 = vmatpush1.bf16.msra.mxu0 0
        %1046 = vmatprep.subr.bf16.mxu0 0
        %1047 = vmatpush1.bf16.msra.mxu0 0
        %1048 = vmatprep.subr.bf16.mxu0 0
        %1049 = vmatpush1.bf16.msra.mxu0 0
        %1050 = vmatprep.subr.bf16.mxu0 0
        %1051 = vmatpush1.bf16.msra.mxu0 0
        %1052 = vmatprep.mubr.bf16.mxu0 0
        %1053 = vmatmul.mubr.bf16.gmra.mrb[0].mxu0 %v1015
        %v1054 = vpop.f32.mrb[0].mxu0
        %v1055 = vadd.f32 %v1006, %v1054
        %v1056 = vpop.f32.mrb[0].mxu0
        %v1057 = vpop.f32.mrb[0].mxu0
        %v1058 = vadd.f32 %v1009, %v1057
        %v1059 = vpop.f32.mrb[0].mxu0
        %1060 = vdwg.mxu0
        %v1061 = vmul.f32 %v1055, %v959
        %v1062 = vmul.f32 %v1058, %v960
        %v1063 = vpack.c.bf16 %v1062, %v1061
        %v1064 = vld [vmem:[#allocation10 + $0x4] sm:$0xf]
        %v1066 = vsel %vm580, %v1063, 0
        %v1069 = vsel %vm725, %v1064, 0
        %1071 = vmatprep.subr.bf16.mxu0 0
        %1072 = vmatpush1.bf16.msra.mxu0 %v1069
        %1073 = vmatprep.subr.bf16.mxu0 0
        %1074 = vmatpush1.bf16.msra.mxu0 0
        %1075 = vmatprep.subr.bf16.mxu0 0
        %1076 = vmatpush1.bf16.msra.mxu0 0
        %1077 = vmatprep.subr.bf16.mxu0 0
        %1078 = vmatpush1.bf16.msra.mxu0 0
        %1079 = vmatprep.subr.bf16.mxu0 0
        %1080 = vmatpush1.bf16.msra.mxu0 0
        %1081 = vmatprep.subr.bf16.mxu0 0
        %1082 = vmatpush1.bf16.msra.mxu0 0
        %1083 = vmatprep.subr.bf16.mxu0 0
        %1084 = vmatpush1.bf16.msra.mxu0 0
        %1085 = vmatprep.subr.bf16.mxu0 0
        %1086 = vmatpush1.bf16.msra.mxu0 0
        %1087 = vmatprep.subr.bf16.mxu0 0
        %1088 = vmatpush1.bf16.msra.mxu0 0
        %1089 = vmatprep.subr.bf16.mxu0 0
        %1090 = vmatpush1.bf16.msra.mxu0 0
        %1091 = vmatprep.subr.bf16.mxu0 0
        %1092 = vmatpush1.bf16.msra.mxu0 0
        %1093 = vmatprep.subr.bf16.mxu0 0
        %1094 = vmatpush1.bf16.msra.mxu0 0
        %1095 = vmatprep.subr.bf16.mxu0 0
        %1096 = vmatpush1.bf16.msra.mxu0 0
        %1097 = vmatprep.subr.bf16.mxu0 0
        %1098 = vmatpush1.bf16.msra.mxu0 0
        %1099 = vmatprep.subr.bf16.mxu0 0
        %1100 = vmatpush1.bf16.msra.mxu0 0
        %1101 = vmatprep.subr.bf16.mxu0 0
        %1102 = vmatpush1.bf16.msra.mxu0 0
        %1103 = vmatprep.mubr.bf16.mxu0 0
        %1104 = vmatmul.mubr.bf16.gmra.mrb[0].mxu0 %v1066
        %v1105 = vpop.f32.mrb[0].mxu0
        %v1106 = vadd.f32 0.0, %v1105
        %v1107 = vpop.f32.mrb[0].mxu0
        %v1108 = vpop.f32.mrb[0].mxu0
        %v1109 = vadd.f32 0.0, %v1108
        %v1110 = vpop.f32.mrb[0].mxu0
        %1111 = vdwg.mxu0
        %v1113 = vsel %vm580, %v819, 0
        %v1116 = vsel %vm725, %v820, 0
        %1118 = vmatprep.subr.bf16.mxu0 0
        %1119 = vmatpush1.bf16.msra.mxu0 %v1116
        %1120 = vmatprep.subr.bf16.mxu0 0
        %1121 = vmatpush1.bf16.msra.mxu0 0
        %1122 = vmatprep.subr.bf16.mxu0 0
        %1123 = vmatpush1.bf16.msra.mxu0 0
        %1124 = vmatprep.subr.bf16.mxu0 0
        %1125 = vmatpush1.bf16.msra.mxu0 0
        %1126 = vmatprep.subr.bf16.mxu0 0
        %1127 = vmatpush1.bf16.msra.mxu0 0
        %1128 = vmatprep.subr.bf16.mxu0 0
        %1129 = vmatpush1.bf16.msra.mxu0 0
        %1130 = vmatprep.subr.bf16.mxu0 0
        %1131 = vmatpush1.bf16.msra.mxu0 0
        %1132 = vmatprep.subr.bf16.mxu0 0
        %1133 = vmatpush1.bf16.msra.mxu0 0
        %1134 = vmatprep.subr.bf16.mxu0 0
        %1135 = vmatpush1.bf16.msra.mxu0 0
        %1136 = vmatprep.subr.bf16.mxu0 0
        %1137 = vmatpush1.bf16.msra.mxu0 0
        %1138 = vmatprep.subr.bf16.mxu0 0
        %1139 = vmatpush1.bf16.msra.mxu0 0
        %1140 = vmatprep.subr.bf16.mxu0 0
        %1141 = vmatpush1.bf16.msra.mxu0 0
        %1142 = vmatprep.subr.bf16.mxu0 0
        %1143 = vmatpush1.bf16.msra.mxu0 0
        %1144 = vmatprep.subr.bf16.mxu0 0
        %1145 = vmatpush1.bf16.msra.mxu0 0
        %1146 = vmatprep.subr.bf16.mxu0 0
        %1147 = vmatpush1.bf16.msra.mxu0 0
        %1148 = vmatprep.subr.bf16.mxu0 0
        %1149 = vmatpush1.bf16.msra.mxu0 0
        %1150 = vmatprep.mubr.bf16.mxu0 0
        %1151 = vmatmul.mubr.bf16.gmra.mrb[0].mxu0 %v1113
        %v1152 = vpop.f32.mrb[0].mxu0
        %v1153 = vadd.f32 %v1106, %v1152
        %v1154 = vpop.f32.mrb[0].mxu0
        %v1155 = vpop.f32.mrb[0].mxu0
        %v1156 = vadd.f32 %v1109, %v1155
        %v1157 = vpop.f32.mrb[0].mxu0
        %1158 = vdwg.mxu0
        %1159 = vrot.lane.b32.xlu0 %v575, 112
        %v1160 = vpop.permute.xlu0 %1159
        %1161 = vrot.lane.b32.xlu0 %v577, 112
        %v1162 = vpop.permute.xlu0 %1161
        %v1164 = vsel %vm580, %v1160, 0
        %v1167 = vsel %vm580, %v1162, 0
        %1169 = vmatprep.subr.bf16.mxu0 0
        %1170 = vmatpush1.bf16.xpose.msra.mxu0 %v1167
        %1171 = vmatprep.subr.bf16.mxu0 0
        %1172 = vmatpush1.bf16.xpose.msra.mxu0 0
        %1173 = vmatprep.subr.bf16.mxu0 0
        %1174 = vmatpush1.bf16.xpose.msra.mxu0 0
        %1175 = vmatprep.subr.bf16.mxu0 0
        %1176 = vmatpush1.bf16.xpose.msra.mxu0 0
        %1177 = vmatprep.subr.bf16.mxu0 0
        %1178 = vmatpush1.bf16.xpose.msra.mxu0 0
        %1179 = vmatprep.subr.bf16.mxu0 0
        %1180 = vmatpush1.bf16.xpose.msra.mxu0 0
        %1181 = vmatprep.subr.bf16.mxu0 0
        %1182 = vmatpush1.bf16.xpose.msra.mxu0 0
        %1183 = vmatprep.subr.bf16.mxu0 0
        %1184 = vmatpush1.bf16.xpose.msra.mxu0 0
        %1185 = vmatprep.subr.bf16.mxu0 0
        %1186 = vmatpush1.bf16.xpose.msra.mxu0 0
        %1187 = vmatprep.subr.bf16.mxu0 0
        %1188 = vmatpush1.bf16.xpose.msra.mxu0 0
        %1189 = vmatprep.subr.bf16.mxu0 0
        %1190 = vmatpush1.bf16.xpose.msra.mxu0 0
        %1191 = vmatprep.subr.bf16.mxu0 0
        %1192 = vmatpush1.bf16.xpose.msra.mxu0 0
        %1193 = vmatprep.subr.bf16.mxu0 0
        %1194 = vmatpush1.bf16.xpose.msra.mxu0 0
        %1195 = vmatprep.subr.bf16.mxu0 0
        %1196 = vmatpush1.bf16.xpose.msra.mxu0 0
        %1197 = vmatprep.subr.bf16.mxu0 0
        %1198 = vmatpush1.bf16.xpose.msra.mxu0 0
        %1199 = vmatprep.subr.bf16.mxu0 0
        %1200 = vmatpush1.bf16.xpose.msra.mxu0 0
        %1201 = vmatprep.mubr.bf16.mxu0 0
        %1202 = vmatmul.mubr.bf16.gmra.mrb[0].mxu0 %v1164
        %v1203 = vpop.f32.mrb[0].mxu0
        %v1204 = vadd.f32 0.0, %v1203
        %v1205 = vpop.f32.mrb[0].mxu0
        %v1206 = vpop.f32.mrb[0].mxu0
        %v1207 = vadd.f32 0.0, %v1206
        %v1208 = vpop.f32.mrb[0].mxu0
        %1209 = vdwg.mxu0
        %1210 = vrot.lane.b32.xlu0 %v577, 80
        %v1211 = vpop.permute.xlu0 %1210
        %v1213 = vsel %vm580, %v1211, 0
        %1215 = vmatprep.subr.bf16.mxu0 0
        %1216 = vmatpush1.bf16.xpose.msra.mxu0 %v1213
        %1217 = vmatprep.subr.bf16.mxu0 0
        %1218 = vmatpush1.bf16.xpose.msra.mxu0 0
        %1219 = vmatprep.subr.bf16.mxu0 0
        %1220 = vmatpush1.bf16.xpose.msra.mxu0 0
        %1221 = vmatprep.subr.bf16.mxu0 0
        %1222 = vmatpush1.bf16.xpose.msra.mxu0 0
        %1223 = vmatprep.subr.bf16.mxu0 0
        %1224 = vmatpush1.bf16.xpose.msra.mxu0 0
        %1225 = vmatprep.subr.bf16.mxu0 0
        %1226 = vmatpush1.bf16.xpose.msra.mxu0 0
        %1227 = vmatprep.subr.bf16.mxu0 0
        %1228 = vmatpush1.bf16.xpose.msra.mxu0 0
        %1229 = vmatprep.subr.bf16.mxu0 0
        %1230 = vmatpush1.bf16.xpose.msra.mxu0 0
        %1231 = vmatprep.subr.bf16.mxu0 0
        %1232 = vmatpush1.bf16.xpose.msra.mxu0 0
        %1233 = vmatprep.subr.bf16.mxu0 0
        %1234 = vmatpush1.bf16.xpose.msra.mxu0 0
        %1235 = vmatprep.subr.bf16.mxu0 0
        %1236 = vmatpush1.bf16.xpose.msra.mxu0 0
        %1237 = vmatprep.subr.bf16.mxu0 0
        %1238 = vmatpush1.bf16.xpose.msra.mxu0 0
        %1239 = vmatprep.subr.bf16.mxu0 0
        %1240 = vmatpush1.bf16.xpose.msra.mxu0 0
        %1241 = vmatprep.subr.bf16.mxu0 0
        %1242 = vmatpush1.bf16.xpose.msra.mxu0 0
        %1243 = vmatprep.subr.bf16.mxu0 0
        %1244 = vmatpush1.bf16.xpose.msra.mxu0 0
        %1245 = vmatprep.subr.bf16.mxu0 0
        %1246 = vmatpush1.bf16.xpose.msra.mxu0 0
        %1247 = vmatprep.mubr.bf16.mxu0 0
        %1248 = vmatmul.mubr.bf16.gmra.mrb[0].mxu0 %v1164
        %v1249 = vpop.f32.mrb[0].mxu0
        %v1250 = vadd.f32 0.0, %v1249
        %v1251 = vpop.f32.mrb[0].mxu0
        %v1252 = vpop.f32.mrb[0].mxu0
        %v1253 = vadd.f32 0.0, %v1252
        %v1254 = vpop.f32.mrb[0].mxu0
        %1255 = vdwg.mxu0
        %v1256 = vsel %vm580, %v1204, -inf
        %1257 = vmax.xlane.f32.xlu0 %v1256
        %v1258 = vpop.xlane.xlu0 %1257
        %v1259 = vsel %vm580, %v1207, -inf
        %1260 = vmax.xlane.f32.xlu0 %v1259
        %v1261 = vpop.xlane.xlu0 %1260
        %v1262 = vsel %vm580, %v1250, -inf
        %1263 = vmax.xlane.f32.xlu0 %v1262
        %v1264 = vpop.xlane.xlu0 %1263
        %v1265 = vsel %vm580, %v1253, -inf
        %1266 = vmax.xlane.f32.xlu0 %v1265
        %v1267 = vpop.xlane.xlu0 %1266
        %v1268 = vmax.f32 %v1258, %v1264
        %v1269 = vmax.f32 %v1261, %v1267
        %v1270 = vsub.f32 %v1204, %v1268
        %v1271 = vsub.f32 %v1207, %v1269
        %v1272 = vmul.f32 %v1270, 1.442695
        %v1273 = vpow.pop %v1272
        %v1274 = vmul.f32 %v1271, 1.442695
        %v1275 = vpow.pop %v1274
        %v1276 = vsub.f32 %v1250, %v1268
        %v1277 = vsub.f32 %v1253, %v1269
        %v1278 = vmul.f32 %v1276, 1.442695
        %v1279 = vpow.pop %v1278
        %v1280 = vmul.f32 %v1277, 1.442695
        %v1281 = vpow.pop %v1280
        %v1282 = vsel %vm580, %v1273, 0.0
        %1283 = vadd.xlane.f32.xlu0 %v1282
        %v1284 = vpop.xlane.xlu0 %1283
        %v1285 = vsel %vm580, %v1275, 0.0
        %1286 = vadd.xlane.f32.xlu0 %v1285
        %v1287 = vpop.xlane.xlu0 %1286
        %v1288 = vsel %vm580, %v1279, 0.0
        %1289 = vadd.xlane.f32.xlu0 %v1288
        %v1290 = vpop.xlane.xlu0 %1289
        %v1291 = vsel %vm580, %v1281, 0.0
        %1292 = vadd.xlane.f32.xlu0 %v1291
        %v1293 = vpop.xlane.xlu0 %1292
        %v1294 = vadd.f32 %v1284, %v1290
        %v1295 = vadd.f32 %v1287, %v1293
        %v1296 = vrcp.pop %v1294
        %v1297 = vrcp.pop %v1295
        %v1298 = vpack.c.bf16 %v1275, %v1273
        %v1299 = vpack.c.bf16 %v1281, %v1279
        %1300 = vrot.lane.b32.xlu0 %v579, 80
        %v1301 = vpop.permute.xlu0 %1300
        %v1303 = vsel %vm580, %v1299, 0
        %v1306 = vsel %vm725, %v1301, 0
        %1308 = vmatprep.subr.bf16.mxu0 0
        %1309 = vmatpush1.bf16.msra.mxu0 %v1306
        %1310 = vmatprep.subr.bf16.mxu0 0
        %1311 = vmatpush1.bf16.msra.mxu0 0
        %1312 = vmatprep.subr.bf16.mxu0 0
        %1313 = vmatpush1.bf16.msra.mxu0 0
        %1314 = vmatprep.subr.bf16.mxu0 0
        %1315 = vmatpush1.bf16.msra.mxu0 0
        %1316 = vmatprep.subr.bf16.mxu0 0
        %1317 = vmatpush1.bf16.msra.mxu0 0
        %1318 = vmatprep.subr.bf16.mxu0 0
        %1319 = vmatpush1.bf16.msra.mxu0 0
        %1320 = vmatprep.subr.bf16.mxu0 0
        %1321 = vmatpush1.bf16.msra.mxu0 0
        %1322 = vmatprep.subr.bf16.mxu0 0
        %1323 = vmatpush1.bf16.msra.mxu0 0
        %1324 = vmatprep.subr.bf16.mxu0 0
        %1325 = vmatpush1.bf16.msra.mxu0 0
        %1326 = vmatprep.subr.bf16.mxu0 0
        %1327 = vmatpush1.bf16.msra.mxu0 0
        %1328 = vmatprep.subr.bf16.mxu0 0
        %1329 = vmatpush1.bf16.msra.mxu0 0
        %1330 = vmatprep.subr.bf16.mxu0 0
        %1331 = vmatpush1.bf16.msra.mxu0 0
        %1332 = vmatprep.subr.bf16.mxu0 0
        %1333 = vmatpush1.bf16.msra.mxu0 0
        %1334 = vmatprep.subr.bf16.mxu0 0
        %1335 = vmatpush1.bf16.msra.mxu0 0
        %1336 = vmatprep.subr.bf16.mxu0 0
        %1337 = vmatpush1.bf16.msra.mxu0 0
        %1338 = vmatprep.subr.bf16.mxu0 0
        %1339 = vmatpush1.bf16.msra.mxu0 0
        %1340 = vmatprep.mubr.bf16.mxu0 0
        %1341 = vmatmul.mubr.bf16.gmra.mrb[0].mxu0 %v1303
        %v1342 = vpop.f32.mrb[0].mxu0
        %v1343 = vadd.f32 0.0, %v1342
        %v1344 = vpop.f32.mrb[0].mxu0
        %v1345 = vpop.f32.mrb[0].mxu0
        %v1346 = vadd.f32 0.0, %v1345
        %v1347 = vpop.f32.mrb[0].mxu0
        %1348 = vdwg.mxu0
        %1349 = vrot.lane.b32.xlu0 %v579, 112
        %v1350 = vpop.permute.xlu0 %1349
        %v1352 = vsel %vm580, %v1298, 0
        %v1355 = vsel %vm725, %v1350, 0
        %1357 = vmatprep.subr.bf16.mxu0 0
        %1358 = vmatpush1.bf16.msra.mxu0 %v1355
        %1359 = vmatprep.subr.bf16.mxu0 0
        %1360 = vmatpush1.bf16.msra.mxu0 0
        %1361 = vmatprep.subr.bf16.mxu0 0
        %1362 = vmatpush1.bf16.msra.mxu0 0
        %1363 = vmatprep.subr.bf16.mxu0 0
        %1364 = vmatpush1.bf16.msra.mxu0 0
        %1365 = vmatprep.subr.bf16.mxu0 0
        %1366 = vmatpush1.bf16.msra.mxu0 0
        %1367 = vmatprep.subr.bf16.mxu0 0
        %1368 = vmatpush1.bf16.msra.mxu0 0
        %1369 = vmatprep.subr.bf16.mxu0 0
        %1370 = vmatpush1.bf16.msra.mxu0 0
        %1371 = vmatprep.subr.bf16.mxu0 0
        %1372 = vmatpush1.bf16.msra.mxu0 0
        %1373 = vmatprep.subr.bf16.mxu0 0
        %1374 = vmatpush1.bf16.msra.mxu0 0
        %1375 = vmatprep.subr.bf16.mxu0 0
        %1376 = vmatpush1.bf16.msra.mxu0 0
        %1377 = vmatprep.subr.bf16.mxu0 0
        %1378 = vmatpush1.bf16.msra.mxu0 0
        %1379 = vmatprep.subr.bf16.mxu0 0
        %1380 = vmatpush1.bf16.msra.mxu0 0
        %1381 = vmatprep.subr.bf16.mxu0 0
        %1382 = vmatpush1.bf16.msra.mxu0 0
        %1383 = vmatprep.subr.bf16.mxu0 0
        %1384 = vmatpush1.bf16.msra.mxu0 0
        %1385 = vmatprep.subr.bf16.mxu0 0
        %1386 = vmatpush1.bf16.msra.mxu0 0
        %1387 = vmatprep.subr.bf16.mxu0 0
        %1388 = vmatpush1.bf16.msra.mxu0 0
        %1389 = vmatprep.mubr.bf16.mxu0 0
        %1390 = vmatmul.mubr.bf16.gmra.mrb[0].mxu0 %v1352
        %v1391 = vpop.f32.mrb[0].mxu0
        %v1392 = vadd.f32 %v1343, %v1391
        %v1393 = vpop.f32.mrb[0].mxu0
        %v1394 = vpop.f32.mrb[0].mxu0
        %v1395 = vadd.f32 %v1346, %v1394
        %v1396 = vpop.f32.mrb[0].mxu0
        %1397 = vdwg.mxu0
        %v1398 = vmul.f32 %v1392, %v1296
        %v1399 = vmul.f32 %v1395, %v1297
        %v1400 = vpack.c.bf16 %v1399, %v1398
        %v1401 = vld [vmem:[#allocation10 + $0x8] sm:$0xf]
        %v1403 = vsel %vm580, %v1400, 0
        %v1406 = vsel %vm725, %v1401, 0
        %1408 = vmatprep.subr.bf16.mxu0 0
        %1409 = vmatpush1.bf16.msra.mxu0 %v1406
        %1410 = vmatprep.subr.bf16.mxu0 0
        %1411 = vmatpush1.bf16.msra.mxu0 0
        %1412 = vmatprep.subr.bf16.mxu0 0
        %1413 = vmatpush1.bf16.msra.mxu0 0
        %1414 = vmatprep.subr.bf16.mxu0 0
        %1415 = vmatpush1.bf16.msra.mxu0 0
        %1416 = vmatprep.subr.bf16.mxu0 0
        %1417 = vmatpush1.bf16.msra.mxu0 0
        %1418 = vmatprep.subr.bf16.mxu0 0
        %1419 = vmatpush1.bf16.msra.mxu0 0
        %1420 = vmatprep.subr.bf16.mxu0 0
        %1421 = vmatpush1.bf16.msra.mxu0 0
        %1422 = vmatprep.subr.bf16.mxu0 0
        %1423 = vmatpush1.bf16.msra.mxu0 0
        %1424 = vmatprep.subr.bf16.mxu0 0
        %1425 = vmatpush1.bf16.msra.mxu0 0
        %1426 = vmatprep.subr.bf16.mxu0 0
        %1427 = vmatpush1.bf16.msra.mxu0 0
        %1428 = vmatprep.subr.bf16.mxu0 0
        %1429 = vmatpush1.bf16.msra.mxu0 0
        %1430 = vmatprep.subr.bf16.mxu0 0
        %1431 = vmatpush1.bf16.msra.mxu0 0
        %1432 = vmatprep.subr.bf16.mxu0 0
        %1433 = vmatpush1.bf16.msra.mxu0 0
        %1434 = vmatprep.subr.bf16.mxu0 0
        %1435 = vmatpush1.bf16.msra.mxu0 0
        %1436 = vmatprep.subr.bf16.mxu0 0
        %1437 = vmatpush1.bf16.msra.mxu0 0
        %1438 = vmatprep.subr.bf16.mxu0 0
        %1439 = vmatpush1.bf16.msra.mxu0 0
        %1440 = vmatprep.mubr.bf16.mxu0 0
        %1441 = vmatmul.mubr.bf16.gmra.mrb[0].mxu0 %v1403
        %v1442 = vpop.f32.mrb[0].mxu0
        %v1443 = vadd.f32 0.0, %v1442
        %v1444 = vpop.f32.mrb[0].mxu0
        %v1445 = vpop.f32.mrb[0].mxu0
        %v1446 = vadd.f32 0.0, %v1445
        %v1447 = vpop.f32.mrb[0].mxu0
        %1448 = vdwg.mxu0
        %v1449 = vadd.f32 %v1153, %v1443
        %v1450 = vadd.f32 %v1156, %v1446
        %1451 = vrot.lane.b32.xlu0 %v575, 104
        %v1452 = vpop.permute.xlu0 %1451
        %1453 = vrot.lane.b32.xlu0 %v577, 104
        %v1454 = vpop.permute.xlu0 %1453
        %v1456 = vsel %vm580, %v1452, 0
        %v1459 = vsel %vm580, %v1454, 0
        %1461 = vmatprep.subr.bf16.mxu0 0
        %1462 = vmatpush1.bf16.xpose.msra.mxu0 %v1459
        %1463 = vmatprep.subr.bf16.mxu0 0
        %1464 = vmatpush1.bf16.xpose.msra.mxu0 0
        %1465 = vmatprep.subr.bf16.mxu0 0
        %1466 = vmatpush1.bf16.xpose.msra.mxu0 0
        %1467 = vmatprep.subr.bf16.mxu0 0
        %1468 = vmatpush1.bf16.xpose.msra.mxu0 0
        %1469 = vmatprep.subr.bf16.mxu0 0
        %1470 = vmatpush1.bf16.xpose.msra.mxu0 0
        %1471 = vmatprep.subr.bf16.mxu0 0
        %1472 = vmatpush1.bf16.xpose.msra.mxu0 0
        %1473 = vmatprep.subr.bf16.mxu0 0
        %1474 = vmatpush1.bf16.xpose.msra.mxu0 0
        %1475 = vmatprep.subr.bf16.mxu0 0
        %1476 = vmatpush1.bf16.xpose.msra.mxu0 0
        %1477 = vmatprep.subr.bf16.mxu0 0
        %1478 = vmatpush1.bf16.xpose.msra.mxu0 0
        %1479 = vmatprep.subr.bf16.mxu0 0
        %1480 = vmatpush1.bf16.xpose.msra.mxu0 0
        %1481 = vmatprep.subr.bf16.mxu0 0
        %1482 = vmatpush1.bf16.xpose.msra.mxu0 0
        %1483 = vmatprep.subr.bf16.mxu0 0
        %1484 = vmatpush1.bf16.xpose.msra.mxu0 0
        %1485 = vmatprep.subr.bf16.mxu0 0
        %1486 = vmatpush1.bf16.xpose.msra.mxu0 0
        %1487 = vmatprep.subr.bf16.mxu0 0
        %1488 = vmatpush1.bf16.xpose.msra.mxu0 0
        %1489 = vmatprep.subr.bf16.mxu0 0
        %1490 = vmatpush1.bf16.xpose.msra.mxu0 0
        %1491 = vmatprep.subr.bf16.mxu0 0
        %1492 = vmatpush1.bf16.xpose.msra.mxu0 0
        %1493 = vmatprep.mubr.bf16.mxu0 0
        %1494 = vmatmul.mubr.bf16.gmra.mrb[0].mxu0 %v1456
        %v1495 = vpop.f32.mrb[0].mxu0
        %v1496 = vadd.f32 0.0, %v1495
        %v1497 = vpop.f32.mrb[0].mxu0
        %v1498 = vpop.f32.mrb[0].mxu0
        %v1499 = vadd.f32 0.0, %v1498
        %v1500 = vpop.f32.mrb[0].mxu0
        %1501 = vdwg.mxu0
        %1502 = vrot.lane.b32.xlu0 %v577, 72
        %v1503 = vpop.permute.xlu0 %1502
        %v1505 = vsel %vm580, %v1503, 0
        %1507 = vmatprep.subr.bf16.mxu0 0
        %1508 = vmatpush1.bf16.xpose.msra.mxu0 %v1505
        %1509 = vmatprep.subr.bf16.mxu0 0
        %1510 = vmatpush1.bf16.xpose.msra.mxu0 0
        %1511 = vmatprep.subr.bf16.mxu0 0
        %1512 = vmatpush1.bf16.xpose.msra.mxu0 0
        %1513 = vmatprep.subr.bf16.mxu0 0
        %1514 = vmatpush1.bf16.xpose.msra.mxu0 0
        %1515 = vmatprep.subr.bf16.mxu0 0
        %1516 = vmatpush1.bf16.xpose.msra.mxu0 0
        %1517 = vmatprep.subr.bf16.mxu0 0
        %1518 = vmatpush1.bf16.xpose.msra.mxu0 0
        %1519 = vmatprep.subr.bf16.mxu0 0
        %1520 = vmatpush1.bf16.xpose.msra.mxu0 0
        %1521 = vmatprep.subr.bf16.mxu0 0
        %1522 = vmatpush1.bf16.xpose.msra.mxu0 0
        %1523 = vmatprep.subr.bf16.mxu0 0
        %1524 = vmatpush1.bf16.xpose.msra.mxu0 0
        %1525 = vmatprep.subr.bf16.mxu0 0
        %1526 = vmatpush1.bf16.xpose.msra.mxu0 0
        %1527 = vmatprep.subr.bf16.mxu0 0
        %1528 = vmatpush1.bf16.xpose.msra.mxu0 0
        %1529 = vmatprep.subr.bf16.mxu0 0
        %1530 = vmatpush1.bf16.xpose.msra.mxu0 0
        %1531 = vmatprep.subr.bf16.mxu0 0
        %1532 = vmatpush1.bf16.xpose.msra.mxu0 0
        %1533 = vmatprep.subr.bf16.mxu0 0
        %1534 = vmatpush1.bf16.xpose.msra.mxu0 0
        %1535 = vmatprep.subr.bf16.mxu0 0
        %1536 = vmatpush1.bf16.xpose.msra.mxu0 0
        %1537 = vmatprep.subr.bf16.mxu0 0
        %1538 = vmatpush1.bf16.xpose.msra.mxu0 0
        %1539 = vmatprep.mubr.bf16.mxu0 0
        %1540 = vmatmul.mubr.bf16.gmra.mrb[0].mxu0 %v1456
        %v1541 = vpop.f32.mrb[0].mxu0
        %v1542 = vadd.f32 0.0, %v1541
        %v1543 = vpop.f32.mrb[0].mxu0
        %v1544 = vpop.f32.mrb[0].mxu0
        %v1545 = vadd.f32 0.0, %v1544
        %v1546 = vpop.f32.mrb[0].mxu0
        %1547 = vdwg.mxu0
        %v1548 = vsel %vm580, %v1496, -inf
        %1549 = vmax.xlane.f32.xlu0 %v1548
        %v1550 = vpop.xlane.xlu0 %1549
        %v1551 = vsel %vm580, %v1499, -inf
        %1552 = vmax.xlane.f32.xlu0 %v1551
        %v1553 = vpop.xlane.xlu0 %1552
        %v1554 = vsel %vm580, %v1542, -inf
        %1555 = vmax.xlane.f32.xlu0 %v1554
        %v1556 = vpop.xlane.xlu0 %1555
        %v1557 = vsel %vm580, %v1545, -inf
        %1558 = vmax.xlane.f32.xlu0 %v1557
        %v1559 = vpop.xlane.xlu0 %1558
        %v1560 = vmax.f32 %v1550, %v1556
        %v1561 = vmax.f32 %v1553, %v1559
        %v1562 = vsub.f32 %v1496, %v1560
        %v1563 = vsub.f32 %v1499, %v1561
        %v1564 = vmul.f32 %v1562, 1.442695
        %v1565 = vpow.pop %v1564
        %v1566 = vmul.f32 %v1563, 1.442695
        %v1567 = vpow.pop %v1566
        %v1568 = vsub.f32 %v1542, %v1560
        %v1569 = vsub.f32 %v1545, %v1561
        %v1570 = vmul.f32 %v1568, 1.442695
        %v1571 = vpow.pop %v1570
        %v1572 = vmul.f32 %v1569, 1.442695
        %v1573 = vpow.pop %v1572
        %v1574 = vsel %vm580, %v1565, 0.0
        %1575 = vadd.xlane.f32.xlu0 %v1574
        %v1576 = vpop.xlane.xlu0 %1575
        %v1577 = vsel %vm580, %v1567, 0.0
        %1578 = vadd.xlane.f32.xlu0 %v1577
        %v1579 = vpop.xlane.xlu0 %1578
        %v1580 = vsel %vm580, %v1571, 0.0
        %1581 = vadd.xlane.f32.xlu0 %v1580
        %v1582 = vpop.xlane.xlu0 %1581
        %v1583 = vsel %vm580, %v1573, 0.0
        %1584 = vadd.xlane.f32.xlu0 %v1583
        %v1585 = vpop.xlane.xlu0 %1584
        %v1586 = vadd.f32 %v1576, %v1582
        %v1587 = vadd.f32 %v1579, %v1585
        %v1588 = vrcp.pop %v1586
        %v1589 = vrcp.pop %v1587
        %v1590 = vpack.c.bf16 %v1567, %v1565
        %v1591 = vpack.c.bf16 %v1573, %v1571
        %1592 = vrot.lane.b32.xlu0 %v579, 72
        %v1593 = vpop.permute.xlu0 %1592
        %v1595 = vsel %vm580, %v1591, 0
        %v1598 = vsel %vm725, %v1593, 0
        %1600 = vmatprep.subr.bf16.mxu0 0
        %1601 = vmatpush1.bf16.msra.mxu0 %v1598
        %1602 = vmatprep.subr.bf16.mxu0 0
        %1603 = vmatpush1.bf16.msra.mxu0 0
        %1604 = vmatprep.subr.bf16.mxu0 0
        %1605 = vmatpush1.bf16.msra.mxu0 0
        %1606 = vmatprep.subr.bf16.mxu0 0
        %1607 = vmatpush1.bf16.msra.mxu0 0
        %1608 = vmatprep.subr.bf16.mxu0 0
        %1609 = vmatpush1.bf16.msra.mxu0 0
        %1610 = vmatprep.subr.bf16.mxu0 0
        %1611 = vmatpush1.bf16.msra.mxu0 0
        %1612 = vmatprep.subr.bf16.mxu0 0
        %1613 = vmatpush1.bf16.msra.mxu0 0
        %1614 = vmatprep.subr.bf16.mxu0 0
        %1615 = vmatpush1.bf16.msra.mxu0 0
        %1616 = vmatprep.subr.bf16.mxu0 0
        %1617 = vmatpush1.bf16.msra.mxu0 0
        %1618 = vmatprep.subr.bf16.mxu0 0
        %1619 = vmatpush1.bf16.msra.mxu0 0
        %1620 = vmatprep.subr.bf16.mxu0 0
        %1621 = vmatpush1.bf16.msra.mxu0 0
        %1622 = vmatprep.subr.bf16.mxu0 0
        %1623 = vmatpush1.bf16.msra.mxu0 0
        %1624 = vmatprep.subr.bf16.mxu0 0
        %1625 = vmatpush1.bf16.msra.mxu0 0
        %1626 = vmatprep.subr.bf16.mxu0 0
        %1627 = vmatpush1.bf16.msra.mxu0 0
        %1628 = vmatprep.subr.bf16.mxu0 0
        %1629 = vmatpush1.bf16.msra.mxu0 0
        %1630 = vmatprep.subr.bf16.mxu0 0
        %1631 = vmatpush1.bf16.msra.mxu0 0
        %1632 = vmatprep.mubr.bf16.mxu0 0
        %1633 = vmatmul.mubr.bf16.gmra.mrb[0].mxu0 %v1595
        %v1634 = vpop.f32.mrb[0].mxu0
        %v1635 = vadd.f32 0.0, %v1634
        %v1636 = vpop.f32.mrb[0].mxu0
        %v1637 = vpop.f32.mrb[0].mxu0
        %v1638 = vadd.f32 0.0, %v1637
        %v1639 = vpop.f32.mrb[0].mxu0
        %1640 = vdwg.mxu0
        %1641 = vrot.lane.b32.xlu0 %v579, 104
        %v1642 = vpop.permute.xlu0 %1641
        %v1644 = vsel %vm580, %v1590, 0
        %v1647 = vsel %vm725, %v1642, 0
        %1649 = vmatprep.subr.bf16.mxu0 0
        %1650 = vmatpush1.bf16.msra.mxu0 %v1647
        %1651 = vmatprep.subr.bf16.mxu0 0
        %1652 = vmatpush1.bf16.msra.mxu0 0
        %1653 = vmatprep.subr.bf16.mxu0 0
        %1654 = vmatpush1.bf16.msra.mxu0 0
        %1655 = vmatprep.subr.bf16.mxu0 0
        %1656 = vmatpush1.bf16.msra.mxu0 0
        %1657 = vmatprep.subr.bf16.mxu0 0
        %1658 = vmatpush1.bf16.msra.mxu0 0
        %1659 = vmatprep.subr.bf16.mxu0 0
        %1660 = vmatpush1.bf16.msra.mxu0 0
        %1661 = vmatprep.subr.bf16.mxu0 0
        %1662 = vmatpush1.bf16.msra.mxu0 0
        %1663 = vmatprep.subr.bf16.mxu0 0
        %1664 = vmatpush1.bf16.msra.mxu0 0
        %1665 = vmatprep.subr.bf16.mxu0 0
        %1666 = vmatpush1.bf16.msra.mxu0 0
        %1667 = vmatprep.subr.bf16.mxu0 0
        %1668 = vmatpush1.bf16.msra.mxu0 0
        %1669 = vmatprep.subr.bf16.mxu0 0
        %1670 = vmatpush1.bf16.msra.mxu0 0
        %1671 = vmatprep.subr.bf16.mxu0 0
        %1672 = vmatpush1.bf16.msra.mxu0 0
        %1673 = vmatprep.subr.bf16.mxu0 0
        %1674 = vmatpush1.bf16.msra.mxu0 0
        %1675 = vmatprep.subr.bf16.mxu0 0
        %1676 = vmatpush1.bf16.msra.mxu0 0
        %1677 = vmatprep.subr.bf16.mxu0 0
        %1678 = vmatpush1.bf16.msra.mxu0 0
        %1679 = vmatprep.subr.bf16.mxu0 0
        %1680 = vmatpush1.bf16.msra.mxu0 0
        %1681 = vmatprep.mubr.bf16.mxu0 0
        %1682 = vmatmul.mubr.bf16.gmra.mrb[0].mxu0 %v1644
        %v1683 = vpop.f32.mrb[0].mxu0
        %v1684 = vadd.f32 %v1635, %v1683
        %v1685 = vpop.f32.mrb[0].mxu0
        %v1686 = vpop.f32.mrb[0].mxu0
        %v1687 = vadd.f32 %v1638, %v1686
        %v1688 = vpop.f32.mrb[0].mxu0
        %1689 = vdwg.mxu0
        %v1690 = vmul.f32 %v1684, %v1588
        %v1691 = vmul.f32 %v1687, %v1589
        %v1692 = vpack.c.bf16 %v1691, %v1690
        %v1693 = vld [vmem:[#allocation10 + $0xc] sm:$0xf]
        %v1695 = vsel %vm580, %v1692, 0
        %v1698 = vsel %vm725, %v1693, 0
        %1700 = vmatprep.subr.bf16.mxu0 0
        %1701 = vmatpush1.bf16.msra.mxu0 %v1698
        %1702 = vmatprep.subr.bf16.mxu0 0
        %1703 = vmatpush1.bf16.msra.mxu0 0
        %1704 = vmatprep.subr.bf16.mxu0 0
        %1705 = vmatpush1.bf16.msra.mxu0 0
        %1706 = vmatprep.subr.bf16.mxu0 0
        %1707 = vmatpush1.bf16.msra.mxu0 0
        %1708 = vmatprep.subr.bf16.mxu0 0
        %1709 = vmatpush1.bf16.msra.mxu0 0
        %1710 = vmatprep.subr.bf16.mxu0 0
        %1711 = vmatpush1.bf16.msra.mxu0 0
        %1712 = vmatprep.subr.bf16.mxu0 0
        %1713 = vmatpush1.bf16.msra.mxu0 0
        %1714 = vmatprep.subr.bf16.mxu0 0
        %1715 = vmatpush1.bf16.msra.mxu0 0
        %1716 = vmatprep.subr.bf16.mxu0 0
        %1717 = vmatpush1.bf16.msra.mxu0 0
        %1718 = vmatprep.subr.bf16.mxu0 0
        %1719 = vmatpush1.bf16.msra.mxu0 0
        %1720 = vmatprep.subr.bf16.mxu0 0
        %1721 = vmatpush1.bf16.msra.mxu0 0
        %1722 = vmatprep.subr.bf16.mxu0 0
        %1723 = vmatpush1.bf16.msra.mxu0 0
        %1724 = vmatprep.subr.bf16.mxu0 0
        %1725 = vmatpush1.bf16.msra.mxu0 0
        %1726 = vmatprep.subr.bf16.mxu0 0
        %1727 = vmatpush1.bf16.msra.mxu0 0
        %1728 = vmatprep.subr.bf16.mxu0 0
        %1729 = vmatpush1.bf16.msra.mxu0 0
        %1730 = vmatprep.subr.bf16.mxu0 0
        %1731 = vmatpush1.bf16.msra.mxu0 0
        %1732 = vmatprep.mubr.bf16.mxu0 0
        %1733 = vmatmul.mubr.bf16.gmra.mrb[0].mxu0 %v1695
        %v1734 = vpop.f32.mrb[0].mxu0
        %v1735 = vadd.f32 0.0, %v1734
        %v1736 = vpop.f32.mrb[0].mxu0
        %v1737 = vpop.f32.mrb[0].mxu0
        %v1738 = vadd.f32 0.0, %v1737
        %v1739 = vpop.f32.mrb[0].mxu0
        %1740 = vdwg.mxu0
        %v1741 = vadd.f32 %v1449, %v1735
        %v1742 = vadd.f32 %v1450, %v1738
        %v1743 = vld [vmem:[%s7] sm:$0x1]
        %v1745 = vlaneseq
        %v1746 = vshrl.u32 %v1745, 7
        %v1747 = vsub.s32 0, %v1746
        %v1748 = vrot.slane %v1743, %v1747
        %v1750 = vadd.f32 %v1741, %v1748
        %v1751 = vadd.f32 %v1742, %v1748
        %1752 = vst.msk [vmem:[%s392] sm:$0xff] %vm396, %v1750
        %1753 = vst.msk [vmem:[%s392 + $0x8] sm:$0xff] %vm396, %v1751
        %s1754 = sand.u32 %s215, 1
        %s1755 = scalar_lea.sflag [#allocation6], %s1754
        %s1756 = sand.u32 %s215, 1
        %s1757 = smul.addr %s1756, 16
        %s1758 = scalar_lea.vmem [#allocation12], %s1757
        // Predicated region
        $region69: #{tpu_custom_call.1} parent=51 // pred_check
          %p1759 = pneg %p225
        $region70: #{tpu_custom_call.1} parent=51 // pred_check_branch
          %1761 = sbr.rel (%p1759) target = $region72
        $region71: #{tpu_custom_call.1} parent=51 // pred_region
          %s1763 = ssub.s32 256, 256
          %1764 = vsyncadd %s1755, %s1763
          %s1765 = smul.addr %s29, 2
          %s1766 = smul.addr %s1765, 128
          %s1767 = scalar_lea.hbm %s8, %s1766
          %s1768 = sshll.u32 %s1758, 4
          %s1769 = int_to_ptr.vmem [resolvable:$true] %s1768
          %1774 = dma.vmem_to_hbm [thread:$0]  %s1769, 256, %s1767, %s1755, 128, 128, 8
        $region72: #{tpu_custom_call.1} parent=51 // pred_fallthru
          _
      $region52: #{tpu_custom_call.1} parent=5 // pred_fallthru
        _
      %p1775 = scmp.le.s32.totalorder 2, %s24
      // Predicated region
      $region73: #{tpu_custom_call.1} parent=5 // pred_check
        %p1776 = pneg %p1775
      $region74: #{tpu_custom_call.1} parent=5 // pred_check_branch
        %1778 = sbr.rel (%p1776) target = $region76
      $region75: #{tpu_custom_call.1} parent=5 // pred_region
        %s1779 = ssub.s32 %s24, 2
        // Predicated region
        $region77: #{tpu_custom_call.1} parent=75 // pred_check
          %p1780 = pneg %p231
        $region78: #{tpu_custom_call.1} parent=75 // pred_check_branch
          %1782 = sbr.rel (%p1780) target = $region80
        $region79: #{tpu_custom_call.1} parent=75 // pred_region
          %s1783 = sand.u32 %s216, 1
          %s1784 = scalar_lea.sflag [#allocation6], %s1783
          %s1785 = sand.u32 %s216, 1
          %s1786 = smul.addr %s1785, 16
          %s1787 = scalar_lea.vmem [#allocation12], %s1786
          %1788 = dma.done %s1784, 256
        $region80: #{tpu_custom_call.1} parent=75 // pred_fallthru
          _
      $region76: #{tpu_custom_call.1} parent=5 // pred_fallthru
        _
    $region6: #{tpu_custom_call.1} parent=1 // loop_footer
      %s28 = sadd.s32 1, %s24
    $region7: #{tpu_custom_call.1} parent=1 // loop_footer_branch
      %23 = sbr.rel target = $region3
    $region8: #{tpu_custom_call.1} parent=1 // loop_exit
      _
    %1789 = vsyncpa [#allocation5], 1
    %s1790 = scalar_lea.sflag [#allocation5], 1
    %1791 = vsyncpa %s1790, 1
    %1792 = vsyncpa [#allocation8], 1
    %s1793 = scalar_lea.sflag [#allocation8], 1
    %1794 = vsyncpa %s1793, 1
    %1795 = vsyncpa [#allocation11], 1
    %1796 = vsyncpa [#allocation6], 1
    %s1797 = scalar_lea.sflag [#allocation6], 1
    %1798 = vsyncpa %s1797, 1

</llo_original>
